<compile_context>
chip_gen: v5e
topology: v5e:2x2
jax: 0.10.0
libtpu: 0.0.40
codegen_flags: <defaults>
</compile_context>

<pallas_src>
import functools

import jax
import jax.numpy as jnp
from jax.experimental import pallas as pl
from jax.experimental.pallas import tpu as pltpu


# ------------------------------- helpers -------------------------------

_VMEM_LIMIT = 32 * 1024 * 1024  # safe on v5e/v6e/v7x; well above what these tiles need


def _pick_tile(dim, cap, align):
    """Largest multiple of `align` that divides `dim` and is <= cap; else the full dim."""
    if dim <= cap:
        return dim
    t = (cap // align) * align
    while t >= align:
        if dim % t == 0:
            return t
        t -= align
    return dim


# --------------------------- tiled linear (GEMM) ---------------------------

def _linear_kernel(x_ref, w_ref, b_ref, o_ref, acc_ref):
    # x: (tm, tk), w: (tk, tn), b: (1, tn), o: (tm, tn), acc: (tm, tn) f32
    @pl.when(pl.program_id(2) == 0)
    def _():
        acc_ref[...] = jnp.zeros(acc_ref.shape, acc_ref.dtype)

    acc_ref[...] += jnp.dot(x_ref[...], w_ref[...], preferred_element_type=jnp.float32)

    @pl.when(pl.program_id(2) == pl.num_programs(2) - 1)
    def _():
        o_ref[...] = (acc_ref[...] + b_ref[...].astype(jnp.float32)).astype(o_ref.dtype)


def _linear(x2d, w, b, *, tm_cap=256, tn_cap=512, tk_cap=512):
    """x2d: (M, K) @ w: (K, N) + b: (N,) -> (M, N), tiled & pipelined."""
    m, kdim = x2d.shape
    n = w.shape[1]
    tm = _pick_tile(m, tm_cap, 8)
    tn = _pick_tile(n, tn_cap, 128)
    tk = _pick_tile(kdim, tk_cap, 128)
    grid = (m // tm, n // tn, kdim // tk)
    return pl.pallas_call(
        _linear_kernel,
        out_shape=jax.ShapeDtypeStruct((m, n), x2d.dtype),
        grid_spec=pltpu.PrefetchScalarGridSpec(
            num_scalar_prefetch=0,
            grid=grid,
            in_specs=[
                pl.BlockSpec((tm, tk), lambda i, j, kk: (i, kk)),
                pl.BlockSpec((tk, tn), lambda i, j, kk: (kk, j)),
                pl.BlockSpec((1, tn), lambda i, j, kk: (0, j)),
            ],
            out_specs=pl.BlockSpec((tm, tn), lambda i, j, kk: (i, j)),
            scratch_shapes=[pltpu.VMEM((tm, tn), jnp.float32)],
        ),
        compiler_params=pltpu.CompilerParams(
            dimension_semantics=("parallel", "parallel", "arbitrary"),
            vmem_limit_bytes=_VMEM_LIMIT,
        ),
        cost_estimate=pl.CostEstimate(
            flops=2 * m * n * kdim,
            transcendentals=0,
            bytes_accessed=4 * (m * kdim + kdim * n + m * n),
        ),
    )(x2d, w, b.reshape(1, n))


# ---------------- fused flash attention + output projection ----------------

def _attn_out_kernel(q_ref, k_ref, v_ref, wo_ref, bo_ref, o_ref,
                     m_sc, l_sc, acc_sc, *, num_heads, head_dim):
    # q_ref: (1, tq, D), k_ref/v_ref: (1, tkv, D), wo: (D, D), bo: (1, D), o: (1, tq, D)
    # scratch: m_sc/l_sc (H, tq, 1), acc_sc (H, tq, hd) -- online-softmax state over the
    # KV grid axis (last, "arbitrary").
    ki = pl.program_id(2)
    H, hd = num_heads, head_dim

    @pl.when(ki == 0)
    def _():
        m_sc[...] = jnp.full(m_sc.shape, -jnp.inf, dtype=m_sc.dtype)
        l_sc[...] = jnp.zeros(l_sc.shape, l_sc.dtype)
        acc_sc[...] = jnp.zeros(acc_sc.shape, acc_sc.dtype)

    q2d = q_ref[0]   # (tq, D) -- scale already folded into wq/bq
    k2d = k_ref[0]   # (tkv, D)
    v2d = v_ref[0]   # (tkv, D)

    # Per-head online softmax; heads are split with static lane slices (no HBM transposes).
    # Static Python loop -> fully unrolled at trace time (H is small).
    # TODO(synk): attn_mask path (masked_fill with -finfo(fp16).max) not wired; module is used with attn_mask=None.
    for h in range(H):
        qh = q2d[:, h * hd:(h + 1) * hd]                     # (tq, hd)
        kh = k2d[:, h * hd:(h + 1) * hd]                     # (tkv, hd)
        vh = v2d[:, h * hd:(h + 1) * hd]                     # (tkv, hd)
        s = jnp.dot(qh, kh.T, preferred_element_type=jnp.float32)   # (tq, tkv) f32
        m_prev = m_sc[h]                                     # (tq, 1)
        m_new = jnp.maximum(m_prev, jnp.max(s, axis=-1, keepdims=True))
        alpha = jnp.exp(m_prev - m_new)
        p = jnp.exp(s - m_new)                               # (tq, tkv) f32
        l_sc[h] = alpha * l_sc[h] + jnp.sum(p, axis=-1, keepdims=True)
        acc_sc[h] = alpha * acc_sc[h] + jnp.dot(
            p.astype(v2d.dtype), vh, preferred_element_type=jnp.float32)
        m_sc[h] = m_new

    @pl.when(ki == pl.num_programs(2) - 1)
    def _():
        # Normalize each head and rebuild a lane-dense (tq, D) slab, then fuse the output
        # projection so the attention result never round-trips through HBM.
        cols = []
        for h in range(H):
            l = l_sc[h]
            inv = pl.reciprocal(l, approx=True)
            inv = inv * (2.0 - l * inv)        # one Newton step -> ~f32-exact, EUP-seeded
            cols.append(acc_sc[h] * inv)       # (tq, hd)
        attn = jnp.concatenate(cols, axis=-1)  # (tq, D)
        out = jnp.dot(attn, wo_ref[...].astype(jnp.float32),
                      preferred_element_type=jnp.float32) + bo_ref[...].astype(jnp.float32)
        o_ref[0] = out.astype(o_ref.dtype)


def _attention_out(qp, kp, vp, wo, bo, *, num_heads, tq_cap=128, tkv_cap=256):
    """qp: (B, Sq, D), kp/vp: (B, Sk, D) -> softmax(q k^T) v @ wo + bo : (B, Sq, D)."""
    B, Sq, D = qp.shape
    Sk = kp.shape[1]
    hd = D // num_heads
    tq = _pick_tile(Sq, tq_cap, 8)
    tkv = _pick_tile(Sk, tkv_cap, 8)
    grid = (B, Sq // tq, Sk // tkv)
    kernel = functools.partial(_attn_out_kernel, num_heads=num_heads, head_dim=hd)
    return pl.pallas_call(
        kernel,
        out_shape=jax.ShapeDtypeStruct((B, Sq, D), qp.dtype),
        grid_spec=pltpu.PrefetchScalarGridSpec(
            num_scalar_prefetch=0,
            grid=grid,
            in_specs=[
                pl.BlockSpec((1, tq, D), lambda b, qi, ki: (b, qi, 0)),
                pl.BlockSpec((1, tkv, D), lambda b, qi, ki: (b, ki, 0)),
                pl.BlockSpec((1, tkv, D), lambda b, qi, ki: (b, ki, 0)),
                pl.BlockSpec((D, D), lambda b, qi, ki: (0, 0)),
                pl.BlockSpec((1, D), lambda b, qi, ki: (0, 0)),
            ],
            out_specs=pl.BlockSpec((1, tq, D), lambda b, qi, ki: (b, qi, 0)),
            scratch_shapes=[
                pltpu.VMEM((num_heads, tq, 1), jnp.float32),   # running max
                pltpu.VMEM((num_heads, tq, 1), jnp.float32),   # running denom
                pltpu.VMEM((num_heads, tq, hd), jnp.float32),  # running numerator
            ],
        ),
        compiler_params=pltpu.CompilerParams(
            dimension_semantics=("parallel", "parallel", "arbitrary"),
            vmem_limit_bytes=_VMEM_LIMIT,
        ),
        cost_estimate=pl.CostEstimate(
            flops=4 * B * num_heads * Sq * Sk * hd + 2 * B * Sq * D * D,
            transcendentals=B * num_heads * Sq * Sk,
            bytes_accessed=4 * (B * Sq * D * 2 + 2 * B * Sk * D + D * D),
        ),
    )(qp, kp, vp, wo, bo.reshape(1, D))


# --------------------------- forward (jitted) ---------------------------

@functools.partial(jax.jit, static_argnames=("num_heads",))
def _forward(params, q, k, v, *, num_heads):
    Sq, B, D = q.shape
    Sk = k.shape[0]

    # (S, B, D) -> (B, S, D); the only external layout ops (plus the inverse at the end).
    qb = jnp.transpose(q, (1, 0, 2)).reshape(B * Sq, D)
    kb = jnp.transpose(k, (1, 0, 2)).reshape(B * Sk, D)
    vb = jnp.transpose(v, (1, 0, 2)).reshape(B * Sk, D)

    qp = _linear(qb, params["wq_s"], params["bq_s"]).reshape(B, Sq, D)  # scale pre-folded
    kp = _linear(kb, params["wk"], params["bk"]).reshape(B, Sk, D)
    vp = _linear(vb, params["wv"], params["bv"]).reshape(B, Sk, D)

    out = _attention_out(qp, kp, vp, params["wo"], params["bo"], num_heads=num_heads)
    return jnp.transpose(out, (1, 0, 2))   # (Sq, B, D)


# --------------------------- module re-implementation ---------------------------

class MultiheadAttentionReplace:
    """JAX/Pallas port of the PyTorch MultiheadAttentionReplace module."""

    def __init__(self, heads, dim, key):
        self.num_heads = heads
        self.embed_dim = dim
        self.head_dim = dim // heads

        # torch.nn.Linear default init: U(-1/sqrt(fan_in), 1/sqrt(fan_in)).
        bound = 1.0 / (dim ** 0.5)
        keys = jax.random.split(key, 8)

        def mk_w(kk):  # stored (in, out); torch stores (out, in) and does x @ W.T
            return jax.random.uniform(kk, (dim, dim), jnp.float32, -bound, bound)

        def mk_b(kk):
            return jax.random.uniform(kk, (dim,), jnp.float32, -bound, bound)

        self.wq, self.bq = mk_w(keys[0]), mk_b(keys[1])
        self.wk, self.bk = mk_w(keys[2]), mk_b(keys[3])
        self.wv, self.bv = mk_w(keys[4]), mk_b(keys[5])
        self.wo, self.bo = mk_w(keys[6]), mk_b(keys[7])

        scale = self.head_dim ** (-0.5)
        self.params = {
            "wq_s": self.wq * scale, "bq_s": self.bq * scale,   # scale folded once at init
            "wk": self.wk, "bk": self.bk,
            "wv": self.wv, "bv": self.bv,
            "wo": self.wo, "bo": self.bo,
        }

    def __call__(self, q, k, v, need_weights=False, attn_mask=None):
        if q is None:
            return self
        assert attn_mask is None  # TODO(synk): attn_mask masked_fill path not implemented
        out = _forward(self.params, q, k, v, num_heads=self.num_heads)
        return (out, 0)


# ----------------------------- reference (plain JAX) -----------------------------

def _reference(module, q, k, v):
    S, B, D = q.shape
    Sk = k.shape[0]
    H, hd = module.num_heads, module.head_dim
    scale = hd ** (-0.5)
    query = (q.reshape(S * B, D) @ module.wq + module.bq) * scale
    key_ = k.reshape(Sk * B, D) @ module.wk + module.bk
    value = v.reshape(Sk * B, D) @ module.wv + module.bv
    query = query.reshape(S, B, H, hd).transpose(1, 2, 0, 3)
    key_ = key_.reshape(Sk, B, H, hd).transpose(1, 2, 0, 3)
    value = value.reshape(Sk, B, H, hd).transpose(1, 2, 0, 3)
    scores = jnp.einsum("bhqd,bhkd->bhqk", query, key_)
    weights = jax.nn.softmax(scores, axis=-1)
    attn = jnp.einsum("bhqk,bhkd->bhqd", weights, value)
    attn = attn.transpose(2, 0, 1, 3).reshape(S * B, D)
    return (attn @ module.wo + module.bo).reshape(S, B, D)


# ----------------------------------- main -----------------------------------

if __name__ == "__main__":
    seq, batch, dim, heads = 8, 2, 32, 4

    root = jax.random.PRNGKey(0)
    k_params, k_x, k_ctx, k_k, k_v = jax.random.split(root, 5)

    module = MultiheadAttentionReplace(heads, dim, k_params)

    # Case 1: self-attention (q == k == v).
    x = jax.random.normal(k_x, (seq, batch, dim), jnp.float32)
    out1, _ = module(x, x, x)
    out1 = jax.block_until_ready(out1)
    ref1 = _reference(module, x, x, x)
    assert out1.shape == (seq, batch, dim)
    assert jnp.allclose(out1, ref1, atol=1e-4, rtol=1e-4), "self-attn mismatch vs reference"

    # Case 2: cross-attention (k == v == context with a longer sequence).
    ctx = jax.random.normal(k_ctx, (2 * seq, batch, dim), jnp.float32)
    out2, _ = module(x, ctx, ctx)
    out2 = jax.block_until_ready(out2)
    ref2 = _reference(module, x, ctx, ctx)
    assert jnp.allclose(out2, ref2, atol=1e-4, rtol=1e-4), "cross-attn mismatch vs reference"

    # Case 3: fully distinct q / k / v.
    kk = jax.random.normal(k_k, (seq, batch, dim), jnp.float32)
    vv = jax.random.normal(k_v, (seq, batch, dim), jnp.float32)
    out3, _ = module(x, kk, vv)
    out3 = jax.block_until_ready(out3)
    ref3 = _reference(module, x, kk, vv)
    assert jnp.allclose(out3, ref3, atol=1e-4, rtol=1e-4), "distinct-qkv mismatch vs reference"

    print("KERNEL_OK")
</pallas_src>

<mosaic_0001>
module attributes {stable_mosaic.version = 11 : i64} {
  func.func @_linear_kernel(%arg0: i32, %arg1: i32, %arg2: i32, %arg3: memref<16x32xf32, #tpu.memory_space<vmem>>, %arg4: memref<32x32xf32, #tpu.memory_space<vmem>>, %arg5: memref<1x32xf32, #tpu.memory_space<vmem>>, %arg6: memref<16x32xf32, #tpu.memory_space<vmem>>, %arg7: memref<16x32xf32, #tpu.memory_space<vmem>>) attributes {dimension_semantics = [#tpu.dimension_semantics<parallel>, #tpu.dimension_semantics<parallel>, #tpu.dimension_semantics<arbitrary>], iteration_bounds = array<i64: 1, 1, 1>, scalar_prefetch = 0 : i64, scratch_operands = 1 : i64, tpu.core_type = #tpu.core_type<tc>, window_params = [{transform_indices = @transform_0, window_bounds = array<i64: 16, 32>}, {transform_indices = @transform_1, window_bounds = array<i64: 32, 32>}, {transform_indices = @transform_2, window_bounds = array<i64: 1, 32>}, {transform_indices = @transform_3, window_bounds = array<i64: 16, 32>}]} {
    %c0_i32 = arith.constant 0 : i32
    %0 = arith.cmpi eq, %arg2, %c0_i32 : i32
    %1 = arith.extui %0 : i1 to i32
    %c0_i32_0 = arith.constant 0 : i32
    %2 = arith.cmpi ne, %1, %c0_i32_0 : i32
    scf.if %2 {
      %cst_10 = arith.constant 0.000000e+00 : f32
      %12 = vector.broadcast %cst_10 : f32 to vector<16x32xf32>
      %c0_11 = arith.constant 0 : index
      %c0_12 = arith.constant 0 : index
      %13 = vector.load %arg7[%c0_11, %c0_12] : memref<16x32xf32, #tpu.memory_space<vmem>>, vector<16x32xf32>
      tpu.vector_store %arg7[%c0_11, %c0_12], %12 {strides = array<i32>} : memref<16x32xf32, #tpu.memory_space<vmem>>, vector<16x32xf32>,
    } else {
    }
    %c0 = arith.constant 0 : index
    %c0_1 = arith.constant 0 : index
    %3 = vector.load %arg7[%c0, %c0_1] : memref<16x32xf32, #tpu.memory_space<vmem>>, vector<16x32xf32>
    %c0_2 = arith.constant 0 : index
    %c0_3 = arith.constant 0 : index
    %4 = vector.load %arg3[%c0_2, %c0_3] : memref<16x32xf32, #tpu.memory_space<vmem>>, vector<16x32xf32>
    %c0_4 = arith.constant 0 : index
    %c0_5 = arith.constant 0 : index
    %5 = vector.load %arg4[%c0_4, %c0_5] : memref<32x32xf32, #tpu.memory_space<vmem>>, vector<32x32xf32>
    %cst = arith.constant dense<0.000000e+00> : vector<16x32xf32>
    %6 = tpu.matmul %4, %5, %cst {dimension_numbers = #tpu.dot_dimension_numbers<[1], [0], [0], [1], [0, 0, 1, 1], [], []>} : vector<16x32xf32>, vector<32x32xf32>, vector<16x32xf32> -> vector<16x32xf32>
    %7 = arith.addf %3, %6 : vector<16x32xf32>
    %c0_6 = arith.constant 0 : index
    %c0_7 = arith.constant 0 : index
    %8 = vector.load %arg7[%c0_6, %c0_7] : memref<16x32xf32, #tpu.memory_space<vmem>>, vector<16x32xf32>
    tpu.vector_store %arg7[%c0_6, %c0_7], %7 {strides = array<i32>} : memref<16x32xf32, #tpu.memory_space<vmem>>, vector<16x32xf32>,
    %c0_i32_8 = arith.constant 0 : i32
    %9 = arith.cmpi eq, %arg2, %c0_i32_8 : i32
    %10 = arith.extui %9 : i1 to i32
    %c0_i32_9 = arith.constant 0 : i32
    %11 = arith.cmpi ne, %10, %c0_i32_9 : i32
    scf.if %11 {
      %c0_10 = arith.constant 0 : index
      %c0_11 = arith.constant 0 : index
      %12 = vector.load %arg7[%c0_10, %c0_11] : memref<16x32xf32, #tpu.memory_space<vmem>>, vector<16x32xf32>
      %c0_12 = arith.constant 0 : index
      %c0_13 = arith.constant 0 : index
      %13 = vector.load %arg5[%c0_12, %c0_13] : memref<1x32xf32, #tpu.memory_space<vmem>>, vector<1x32xf32>
      %14 = vector.broadcast %13 : vector<1x32xf32> to vector<16x32xf32>
      %15 = arith.addf %12, %14 : vector<16x32xf32>
      %c0_14 = arith.constant 0 : index
      %c0_15 = arith.constant 0 : index
      %16 = vector.load %arg6[%c0_14, %c0_15] : memref<16x32xf32, #tpu.memory_space<vmem>>, vector<16x32xf32>
      tpu.vector_store %arg6[%c0_14, %c0_15], %15 {strides = array<i32>} : memref<16x32xf32, #tpu.memory_space<vmem>>, vector<16x32xf32>,
    } else {
    }
    return
  }
  func.func @transform_0(%arg0: i32, %arg1: i32, %arg2: i32) -> (i32, i32) {
    %c0_i32 = arith.constant 0 : i32
    return %arg0, %arg2 : i32, i32
  }
  func.func @transform_1(%arg0: i32, %arg1: i32, %arg2: i32) -> (i32, i32) {
    %c0_i32 = arith.constant 0 : i32
    return %arg2, %arg1 : i32, i32
  }
  func.func @transform_2(%arg0: i32, %arg1: i32, %arg2: i32) -> (i32, i32) {
    %c0_i32 = arith.constant 0 : i32
    %c0_i32_0 = arith.constant 0 : i32
    return %c0_i32, %arg1 : i32, i32
  }
  func.func @transform_3(%arg0: i32, %arg1: i32, %arg2: i32) -> (i32, i32) {
    %c0_i32 = arith.constant 0 : i32
    return %arg0, %arg1 : i32, i32
  }
}

module attributes {stable_mosaic.version = 11 : i64} {
  func.func @_attn_out_kernel(%arg0: i32, %arg1: i32, %arg2: i32, %arg3: memref<1x8x32xf32, #tpu.memory_space<vmem>>, %arg4: memref<1x8x32xf32, #tpu.memory_space<vmem>>, %arg5: memref<1x8x32xf32, #tpu.memory_space<vmem>>, %arg6: memref<32x32xf32, #tpu.memory_space<vmem>>, %arg7: memref<1x32xf32, #tpu.memory_space<vmem>>, %arg8: memref<1x8x32xf32, #tpu.memory_space<vmem>>, %arg9: memref<4x8x1xf32, #tpu.memory_space<vmem>>, %arg10: memref<4x8x1xf32, #tpu.memory_space<vmem>>, %arg11: memref<4x8x8xf32, #tpu.memory_space<vmem>>) attributes {dimension_semantics = [#tpu.dimension_semantics<parallel>, #tpu.dimension_semantics<parallel>, #tpu.dimension_semantics<arbitrary>], iteration_bounds = array<i64: 2, 1, 1>, scalar_prefetch = 0 : i64, scratch_operands = 3 : i64, tpu.core_type = #tpu.core_type<tc>, window_params = [{transform_indices = @transform_0, window_bounds = array<i64: 1, 8, 32>}, {transform_indices = @transform_1, window_bounds = array<i64: 1, 8, 32>}, {transform_indices = @transform_2, window_bounds = array<i64: 1, 8, 32>}, {pipeline_mode = #tpu.pipeline_mode<synchronous>, transform_indices = @transform_3, window_bounds = array<i64: 32, 32>}, {pipeline_mode = #tpu.pipeline_mode<synchronous>, transform_indices = @transform_4, window_bounds = array<i64: 1, 32>}, {transform_indices = @transform_5, window_bounds = array<i64: 1, 8, 32>}]} {
    %c0_i32 = arith.constant 0 : i32
    %0 = arith.cmpi eq, %arg2, %c0_i32 : i32
    %1 = arith.extui %0 : i1 to i32
    %c0_i32_0 = arith.constant 0 : i32
    %2 = arith.cmpi ne, %1, %c0_i32_0 : i32
    scf.if %2 {
      %cst_95 = arith.constant 0xFF800000 : f32
      %156 = vector.broadcast %cst_95 : f32 to vector<4x8x1xf32>
      %c0_96 = arith.constant 0 : index
      %c0_97 = arith.constant 0 : index
      %c0_98 = arith.constant 0 : index
      %157 = vector.load %arg9[%c0_96, %c0_97, %c0_98] : memref<4x8x1xf32, #tpu.memory_space<vmem>>, vector<4x8x1xf32>
      tpu.vector_store %arg9[%c0_96, %c0_97, %c0_98], %156 {strides = array<i32>} : memref<4x8x1xf32, #tpu.memory_space<vmem>>, vector<4x8x1xf32>,
      %cst_99 = arith.constant 0.000000e+00 : f32
      %158 = vector.broadcast %cst_99 : f32 to vector<4x8x1xf32>
      %c0_100 = arith.constant 0 : index
      %c0_101 = arith.constant 0 : index
      %c0_102 = arith.constant 0 : index
      %159 = vector.load %arg10[%c0_100, %c0_101, %c0_102] : memref<4x8x1xf32, #tpu.memory_space<vmem>>, vector<4x8x1xf32>
      tpu.vector_store %arg10[%c0_100, %c0_101, %c0_102], %158 {strides = array<i32>} : memref<4x8x1xf32, #tpu.memory_space<vmem>>, vector<4x8x1xf32>,
      %cst_103 = arith.constant 0.000000e+00 : f32
      %160 = vector.broadcast %cst_103 : f32 to vector<4x8x8xf32>
      %c0_104 = arith.constant 0 : index
      %c0_105 = arith.constant 0 : index
      %c0_106 = arith.constant 0 : index
      %161 = vector.load %arg11[%c0_104, %c0_105, %c0_106] : memref<4x8x8xf32, #tpu.memory_space<vmem>>, vector<4x8x8xf32>
      tpu.vector_store %arg11[%c0_104, %c0_105, %c0_106], %160 {strides = array<i32>} : memref<4x8x8xf32, #tpu.memory_space<vmem>>, vector<4x8x8xf32>,
    } else {
    }
    %c0 = arith.constant 0 : index
    %c0_1 = arith.constant 0 : index
    %c0_2 = arith.constant 0 : index
    %3 = vector.load %arg3[%c0, %c0_1, %c0_2] : memref<1x8x32xf32, #tpu.memory_space<vmem>>, vector<1x8x32xf32>
    %4 = vector.shape_cast %3 : vector<1x8x32xf32> to vector<8x32xf32>
    %c0_3 = arith.constant 0 : index
    %c0_4 = arith.constant 0 : index
    %c0_5 = arith.constant 0 : index
    %5 = vector.load %arg4[%c0_3, %c0_4, %c0_5] : memref<1x8x32xf32, #tpu.memory_space<vmem>>, vector<1x8x32xf32>
    %6 = vector.shape_cast %5 : vector<1x8x32xf32> to vector<8x32xf32>
    %c0_6 = arith.constant 0 : index
    %c0_7 = arith.constant 0 : index
    %c0_8 = arith.constant 0 : index
    %7 = vector.load %arg5[%c0_6, %c0_7, %c0_8] : memref<1x8x32xf32, #tpu.memory_space<vmem>>, vector<1x8x32xf32>
    %8 = vector.shape_cast %7 : vector<1x8x32xf32> to vector<8x32xf32>
    %9 = vector.extract_strided_slice %4 {offsets = [0, 0], sizes = [8, 8], strides = [1, 1]} : vector<8x32xf32> to vector<8x8xf32>
    %10 = vector.extract_strided_slice %6 {offsets = [0, 0], sizes = [8, 8], strides = [1, 1]} : vector<8x32xf32> to vector<8x8xf32>
    %11 = vector.extract_strided_slice %8 {offsets = [0, 0], sizes = [8, 8], strides = [1, 1]} : vector<8x32xf32> to vector<8x8xf32>
    %12 = tpu.transpose %10, [1, 0] : vector<8x8xf32> -> vector<8x8xf32>
    %cst = arith.constant dense<0.000000e+00> : vector<8x8xf32>
    %13 = tpu.matmul %9, %12, %cst {dimension_numbers = #tpu.dot_dimension_numbers<[1], [0], [0], [1], [0, 0, 1, 1], [], []>} : vector<8x8xf32>, vector<8x8xf32>, vector<8x8xf32> -> vector<8x8xf32>
    %c0_9 = arith.constant 0 : index
    %c0_10 = arith.constant 0 : index
    %c0_11 = arith.constant 0 : index
    %14 = vector.load %arg9[%c0_9, %c0_10, %c0_11] : memref<4x8x1xf32, #tpu.memory_space<vmem>>, vector<1x8x1xf32>
    %15 = vector.shape_cast %14 : vector<1x8x1xf32> to vector<8x1xf32>
    %cst_12 = arith.constant dense<0xFF800000> : vector<8xf32>
    %16 = vector.multi_reduction <maximumf>, %13, %cst_12 [1] : vector<8x8xf32> to vector<8xf32>
    %17 = vector.shape_cast %16 : vector<8xf32> to vector<8x1xf32>
    %18 = arith.maximumf %15, %17 : vector<8x1xf32>
    %19 = arith.subf %15, %18 : vector<8x1xf32>
    %20 = math.exp %19 : vector<8x1xf32>
    %21 = vector.broadcast %18 : vector<8x1xf32> to vector<8x8xf32>
    %22 = arith.subf %13, %21 : vector<8x8xf32>
    %23 = math.exp %22 : vector<8x8xf32>
    %c0_13 = arith.constant 0 : index
    %c0_14 = arith.constant 0 : index
    %c0_15 = arith.constant 0 : index
    %24 = vector.load %arg10[%c0_13, %c0_14, %c0_15] : memref<4x8x1xf32, #tpu.memory_space<vmem>>, vector<1x8x1xf32>
    %25 = vector.shape_cast %24 : vector<1x8x1xf32> to vector<8x1xf32>
    %26 = arith.mulf %20, %25 : vector<8x1xf32>
    %cst_16 = arith.constant dense<0.000000e+00> : vector<8xf32>
    %27 = vector.multi_reduction <add>, %23, %cst_16 [1] : vector<8x8xf32> to vector<8xf32>
    %28 = vector.shape_cast %27 : vector<8xf32> to vector<8x1xf32>
    %29 = arith.addf %26, %28 : vector<8x1xf32>
    %c0_17 = arith.constant 0 : index
    %c0_18 = arith.constant 0 : index
    %c0_19 = arith.constant 0 : index
    %30 = vector.load %arg10[%c0_17, %c0_18, %c0_19] : memref<4x8x1xf32, #tpu.memory_space<vmem>>, vector<1x8x1xf32>
    %31 = vector.shape_cast %30 : vector<1x8x1xf32> to vector<8x1xf32>
    %32 = vector.shape_cast %29 : vector<8x1xf32> to vector<1x8x1xf32>
    tpu.vector_store %arg10[%c0_17, %c0_18, %c0_19], %32 {strides = array<i32>} : memref<4x8x1xf32, #tpu.memory_space<vmem>>, vector<1x8x1xf32>,
    %c0_20 = arith.constant 0 : index
    %c0_21 = arith.constant 0 : index
    %c0_22 = arith.constant 0 : index
    %33 = vector.load %arg11[%c0_20, %c0_21, %c0_22] : memref<4x8x8xf32, #tpu.memory_space<vmem>>, vector<1x8x8xf32>
    %34 = vector.shape_cast %33 : vector<1x8x8xf32> to vector<8x8xf32>
    %35 = vector.broadcast %20 : vector<8x1xf32> to vector<8x8xf32>
    %36 = arith.mulf %35, %34 : vector<8x8xf32>
    %cst_23 = arith.constant dense<0.000000e+00> : vector<8x8xf32>
    %37 = tpu.matmul %23, %11, %cst_23 {dimension_numbers = #tpu.dot_dimension_numbers<[1], [0], [0], [1], [0, 0, 1, 1], [], []>} : vector<8x8xf32>, vector<8x8xf32>, vector<8x8xf32> -> vector<8x8xf32>
    %38 = arith.addf %36, %37 : vector<8x8xf32>
    %c0_24 = arith.constant 0 : index
    %c0_25 = arith.constant 0 : index
    %c0_26 = arith.constant 0 : index
    %39 = vector.load %arg11[%c0_24, %c0_25, %c0_26] : memref<4x8x8xf32, #tpu.memory_space<vmem>>, vector<1x8x8xf32>
    %40 = vector.shape_cast %39 : vector<1x8x8xf32> to vector<8x8xf32>
    %41 = vector.shape_cast %38 : vector<8x8xf32> to vector<1x8x8xf32>
    tpu.vector_store %arg11[%c0_24, %c0_25, %c0_26], %41 {strides = array<i32>} : memref<4x8x8xf32, #tpu.memory_space<vmem>>, vector<1x8x8xf32>,
    %c0_27 = arith.constant 0 : index
    %c0_28 = arith.constant 0 : index
    %c0_29 = arith.constant 0 : index
    %42 = vector.load %arg9[%c0_27, %c0_28, %c0_29] : memref<4x8x1xf32, #tpu.memory_space<vmem>>, vector<1x8x1xf32>
    %43 = vector.shape_cast %42 : vector<1x8x1xf32> to vector<8x1xf32>
    %44 = vector.shape_cast %18 : vector<8x1xf32> to vector<1x8x1xf32>
    tpu.vector_store %arg9[%c0_27, %c0_28, %c0_29], %44 {strides = array<i32>} : memref<4x8x1xf32, #tpu.memory_space<vmem>>, vector<1x8x1xf32>,
    %45 = vector.extract_strided_slice %4 {offsets = [0, 8], sizes = [8, 8], strides = [1, 1]} : vector<8x32xf32> to vector<8x8xf32>
    %46 = vector.extract_strided_slice %6 {offsets = [0, 8], sizes = [8, 8], strides = [1, 1]} : vector<8x32xf32> to vector<8x8xf32>
    %47 = vector.extract_strided_slice %8 {offsets = [0, 8], sizes = [8, 8], strides = [1, 1]} : vector<8x32xf32> to vector<8x8xf32>
    %48 = tpu.transpose %46, [1, 0] : vector<8x8xf32> -> vector<8x8xf32>
    %cst_30 = arith.constant dense<0.000000e+00> : vector<8x8xf32>
    %49 = tpu.matmul %45, %48, %cst_30 {dimension_numbers = #tpu.dot_dimension_numbers<[1], [0], [0], [1], [0, 0, 1, 1], [], []>} : vector<8x8xf32>, vector<8x8xf32>, vector<8x8xf32> -> vector<8x8xf32>
    %c1 = arith.constant 1 : index
    %c0_31 = arith.constant 0 : index
    %c0_32 = arith.constant 0 : index
    %50 = vector.load %arg9[%c1, %c0_31, %c0_32] : memref<4x8x1xf32, #tpu.memory_space<vmem>>, vector<1x8x1xf32>
    %51 = vector.shape_cast %50 : vector<1x8x1xf32> to vector<8x1xf32>
    %cst_33 = arith.constant dense<0xFF800000> : vector<8xf32>
    %52 = vector.multi_reduction <maximumf>, %49, %cst_33 [1] : vector<8x8xf32> to vector<8xf32>
    %53 = vector.shape_cast %52 : vector<8xf32> to vector<8x1xf32>
    %54 = arith.maximumf %51, %53 : vector<8x1xf32>
    %55 = arith.subf %51, %54 : vector<8x1xf32>
    %56 = math.exp %55 : vector<8x1xf32>
    %57 = vector.broadcast %54 : vector<8x1xf32> to vector<8x8xf32>
    %58 = arith.subf %49, %57 : vector<8x8xf32>
    %59 = math.exp %58 : vector<8x8xf32>
    %c1_34 = arith.constant 1 : index
    %c0_35 = arith.constant 0 : index
    %c0_36 = arith.constant 0 : index
    %60 = vector.load %arg10[%c1_34, %c0_35, %c0_36] : memref<4x8x1xf32, #tpu.memory_space<vmem>>, vector<1x8x1xf32>
    %61 = vector.shape_cast %60 : vector<1x8x1xf32> to vector<8x1xf32>
    %62 = arith.mulf %56, %61 : vector<8x1xf32>
    %cst_37 = arith.constant dense<0.000000e+00> : vector<8xf32>
    %63 = vector.multi_reduction <add>, %59, %cst_37 [1] : vector<8x8xf32> to vector<8xf32>
    %64 = vector.shape_cast %63 : vector<8xf32> to vector<8x1xf32>
    %65 = arith.addf %62, %64 : vector<8x1xf32>
    %c1_38 = arith.constant 1 : index
    %c0_39 = arith.constant 0 : index
    %c0_40 = arith.constant 0 : index
    %66 = vector.load %arg10[%c1_38, %c0_39, %c0_40] : memref<4x8x1xf32, #tpu.memory_space<vmem>>, vector<1x8x1xf32>
    %67 = vector.shape_cast %66 : vector<1x8x1xf32> to vector<8x1xf32>
    %68 = vector.shape_cast %65 : vector<8x1xf32> to vector<1x8x1xf32>
    tpu.vector_store %arg10[%c1_38, %c0_39, %c0_40], %68 {strides = array<i32>} : memref<4x8x1xf32, #tpu.memory_space<vmem>>, vector<1x8x1xf32>,
    %c1_41 = arith.constant 1 : index
    %c0_42 = arith.constant 0 : index
    %c0_43 = arith.constant 0 : index
    %69 = vector.load %arg11[%c1_41, %c0_42, %c0_43] : memref<4x8x8xf32, #tpu.memory_space<vmem>>, vector<1x8x8xf32>
    %70 = vector.shape_cast %69 : vector<1x8x8xf32> to vector<8x8xf32>
    %71 = vector.broadcast %56 : vector<8x1xf32> to vector<8x8xf32>
    %72 = arith.mulf %71, %70 : vector<8x8xf32>
    %cst_44 = arith.constant dense<0.000000e+00> : vector<8x8xf32>
    %73 = tpu.matmul %59, %47, %cst_44 {dimension_numbers = #tpu.dot_dimension_numbers<[1], [0], [0], [1], [0, 0, 1, 1], [], []>} : vector<8x8xf32>, vector<8x8xf32>, vector<8x8xf32> -> vector<8x8xf32>
    %74 = arith.addf %72, %73 : vector<8x8xf32>
    %c1_45 = arith.constant 1 : index
    %c0_46 = arith.constant 0 : index
    %c0_47 = arith.constant 0 : index
    %75 = vector.load %arg11[%c1_45, %c0_46, %c0_47] : memref<4x8x8xf32, #tpu.memory_space<vmem>>, vector<1x8x8xf32>
    %76 = vector.shape_cast %75 : vector<1x8x8xf32> to vector<8x8xf32>
    %77 = vector.shape_cast %74 : vector<8x8xf32> to vector<1x8x8xf32>
    tpu.vector_store %arg11[%c1_45, %c0_46, %c0_47], %77 {strides = array<i32>} : memref<4x8x8xf32, #tpu.memory_space<vmem>>, vector<1x8x8xf32>,
    %c1_48 = arith.constant 1 : index
    %c0_49 = arith.constant 0 : index
    %c0_50 = arith.constant 0 : index
    %78 = vector.load %arg9[%c1_48, %c0_49, %c0_50] : memref<4x8x1xf32, #tpu.memory_space<vmem>>, vector<1x8x1xf32>
    %79 = vector.shape_cast %78 : vector<1x8x1xf32> to vector<8x1xf32>
    %80 = vector.shape_cast %54 : vector<8x1xf32> to vector<1x8x1xf32>
    tpu.vector_store %arg9[%c1_48, %c0_49, %c0_50], %80 {strides = array<i32>} : memref<4x8x1xf32, #tpu.memory_space<vmem>>, vector<1x8x1xf32>,
    %81 = vector.extract_strided_slice %4 {offsets = [0, 16], sizes = [8, 8], strides = [1, 1]} : vector<8x32xf32> to vector<8x8xf32>
    %82 = vector.extract_strided_slice %6 {offsets = [0, 16], sizes = [8, 8], strides = [1, 1]} : vector<8x32xf32> to vector<8x8xf32>
    %83 = vector.extract_strided_slice %8 {offsets = [0, 16], sizes = [8, 8], strides = [1, 1]} : vector<8x32xf32> to vector<8x8xf32>
    %84 = tpu.transpose %82, [1, 0] : vector<8x8xf32> -> vector<8x8xf32>
    %cst_51 = arith.constant dense<0.000000e+00> : vector<8x8xf32>
    %85 = tpu.matmul %81, %84, %cst_51 {dimension_numbers = #tpu.dot_dimension_numbers<[1], [0], [0], [1], [0, 0, 1, 1], [], []>} : vector<8x8xf32>, vector<8x8xf32>, vector<8x8xf32> -> vector<8x8xf32>
    %c2 = arith.constant 2 : index
    %c0_52 = arith.constant 0 : index
    %c0_53 = arith.constant 0 : index
    %86 = vector.load %arg9[%c2, %c0_52, %c0_53] : memref<4x8x1xf32, #tpu.memory_space<vmem>>, vector<1x8x1xf32>
    %87 = vector.shape_cast %86 : vector<1x8x1xf32> to vector<8x1xf32>
    %cst_54 = arith.constant dense<0xFF800000> : vector<8xf32>
    %88 = vector.multi_reduction <maximumf>, %85, %cst_54 [1] : vector<8x8xf32> to vector<8xf32>
    %89 = vector.shape_cast %88 : vector<8xf32> to vector<8x1xf32>
    %90 = arith.maximumf %87, %89 : vector<8x1xf32>
    %91 = arith.subf %87, %90 : vector<8x1xf32>
    %92 = math.exp %91 : vector<8x1xf32>
    %93 = vector.broadcast %90 : vector<8x1xf32> to vector<8x8xf32>
    %94 = arith.subf %85, %93 : vector<8x8xf32>
    %95 = math.exp %94 : vector<8x8xf32>
    %c2_55 = arith.constant 2 : index
    %c0_56 = arith.constant 0 : index
    %c0_57 = arith.constant 0 : index
    %96 = vector.load %arg10[%c2_55, %c0_56, %c0_57] : memref<4x8x1xf32, #tpu.memory_space<vmem>>, vector<1x8x1xf32>
    %97 = vector.shape_cast %96 : vector<1x8x1xf32> to vector<8x1xf32>
    %98 = arith.mulf %92, %97 : vector<8x1xf32>
    %cst_58 = arith.constant dense<0.000000e+00> : vector<8xf32>
    %99 = vector.multi_reduction <add>, %95, %cst_58 [1] : vector<8x8xf32> to vector<8xf32>
    %100 = vector.shape_cast %99 : vector<8xf32> to vector<8x1xf32>
    %101 = arith.addf %98, %100 : vector<8x1xf32>
    %c2_59 = arith.constant 2 : index
    %c0_60 = arith.constant 0 : index
    %c0_61 = arith.constant 0 : index
    %102 = vector.load %arg10[%c2_59, %c0_60, %c0_61] : memref<4x8x1xf32, #tpu.memory_space<vmem>>, vector<1x8x1xf32>
    %103 = vector.shape_cast %102 : vector<1x8x1xf32> to vector<8x1xf32>
    %104 = vector.shape_cast %101 : vector<8x1xf32> to vector<1x8x1xf32>
    tpu.vector_store %arg10[%c2_59, %c0_60, %c0_61], %104 {strides = array<i32>} : memref<4x8x1xf32, #tpu.memory_space<vmem>>, vector<1x8x1xf32>,
    %c2_62 = arith.constant 2 : index
    %c0_63 = arith.constant 0 : index
    %c0_64 = arith.constant 0 : index
    %105 = vector.load %arg11[%c2_62, %c0_63, %c0_64] : memref<4x8x8xf32, #tpu.memory_space<vmem>>, vector<1x8x8xf32>
    %106 = vector.shape_cast %105 : vector<1x8x8xf32> to vector<8x8xf32>
    %107 = vector.broadcast %92 : vector<8x1xf32> to vector<8x8xf32>
    %108 = arith.mulf %107, %106 : vector<8x8xf32>
    %cst_65 = arith.constant dense<0.000000e+00> : vector<8x8xf32>
    %109 = tpu.matmul %95, %83, %cst_65 {dimension_numbers = #tpu.dot_dimension_numbers<[1], [0], [0], [1], [0, 0, 1, 1], [], []>} : vector<8x8xf32>, vector<8x8xf32>, vector<8x8xf32> -> vector<8x8xf32>
    %110 = arith.addf %108, %109 : vector<8x8xf32>
    %c2_66 = arith.constant 2 : index
    %c0_67 = arith.constant 0 : index
    %c0_68 = arith.constant 0 : index
    %111 = vector.load %arg11[%c2_66, %c0_67, %c0_68] : memref<4x8x8xf32, #tpu.memory_space<vmem>>, vector<1x8x8xf32>
    %112 = vector.shape_cast %111 : vector<1x8x8xf32> to vector<8x8xf32>
    %113 = vector.shape_cast %110 : vector<8x8xf32> to vector<1x8x8xf32>
    tpu.vector_store %arg11[%c2_66, %c0_67, %c0_68], %113 {strides = array<i32>} : memref<4x8x8xf32, #tpu.memory_space<vmem>>, vector<1x8x8xf32>,
    %c2_69 = arith.constant 2 : index
    %c0_70 = arith.constant 0 : index
    %c0_71 = arith.constant 0 : index
    %114 = vector.load %arg9[%c2_69, %c0_70, %c0_71] : memref<4x8x1xf32, #tpu.memory_space<vmem>>, vector<1x8x1xf32>
    %115 = vector.shape_cast %114 : vector<1x8x1xf32> to vector<8x1xf32>
    %116 = vector.shape_cast %90 : vector<8x1xf32> to vector<1x8x1xf32>
    tpu.vector_store %arg9[%c2_69, %c0_70, %c0_71], %116 {strides = array<i32>} : memref<4x8x1xf32, #tpu.memory_space<vmem>>, vector<1x8x1xf32>,
    %117 = vector.extract_strided_slice %4 {offsets = [0, 24], sizes = [8, 8], strides = [1, 1]} : vector<8x32xf32> to vector<8x8xf32>
    %118 = vector.extract_strided_slice %6 {offsets = [0, 24], sizes = [8, 8], strides = [1, 1]} : vector<8x32xf32> to vector<8x8xf32>
    %119 = vector.extract_strided_slice %8 {offsets = [0, 24], sizes = [8, 8], strides = [1, 1]} : vector<8x32xf32> to vector<8x8xf32>
    %120 = tpu.transpose %118, [1, 0] : vector<8x8xf32> -> vector<8x8xf32>
    %cst_72 = arith.constant dense<0.000000e+00> : vector<8x8xf32>
    %121 = tpu.matmul %117, %120, %cst_72 {dimension_numbers = #tpu.dot_dimension_numbers<[1], [0], [0], [1], [0, 0, 1, 1], [], []>} : vector<8x8xf32>, vector<8x8xf32>, vector<8x8xf32> -> vector<8x8xf32>
    %c3 = arith.constant 3 : index
    %c0_73 = arith.constant 0 : index
    %c0_74 = arith.constant 0 : index
    %122 = vector.load %arg9[%c3, %c0_73, %c0_74] : memref<4x8x1xf32, #tpu.memory_space<vmem>>, vector<1x8x1xf32>
    %123 = vector.shape_cast %122 : vector<1x8x1xf32> to vector<8x1xf32>
    %cst_75 = arith.constant dense<0xFF800000> : vector<8xf32>
    %124 = vector.multi_reduction <maximumf>, %121, %cst_75 [1] : vector<8x8xf32> to vector<8xf32>
    %125 = vector.shape_cast %124 : vector<8xf32> to vector<8x1xf32>
    %126 = arith.maximumf %123, %125 : vector<8x1xf32>
    %127 = arith.subf %123, %126 : vector<8x1xf32>
    %128 = math.exp %127 : vector<8x1xf32>
    %129 = vector.broadcast %126 : vector<8x1xf32> to vector<8x8xf32>
    %130 = arith.subf %121, %129 : vector<8x8xf32>
    %131 = math.exp %130 : vector<8x8xf32>
    %c3_76 = arith.constant 3 : index
    %c0_77 = arith.constant 0 : index
    %c0_78 = arith.constant 0 : index
    %132 = vector.load %arg10[%c3_76, %c0_77, %c0_78] : memref<4x8x1xf32, #tpu.memory_space<vmem>>, vector<1x8x1xf32>
    %133 = vector.shape_cast %132 : vector<1x8x1xf32> to vector<8x1xf32>
    %134 = arith.mulf %128, %133 : vector<8x1xf32>
    %cst_79 = arith.constant dense<0.000000e+00> : vector<8xf32>
    %135 = vector.multi_reduction <add>, %131, %cst_79 [1] : vector<8x8xf32> to vector<8xf32>
    %136 = vector.shape_cast %135 : vector<8xf32> to vector<8x1xf32>
    %137 = arith.addf %134, %136 : vector<8x1xf32>
    %c3_80 = arith.constant 3 : index
    %c0_81 = arith.constant 0 : index
    %c0_82 = arith.constant 0 : index
    %138 = vector.load %arg10[%c3_80, %c0_81, %c0_82] : memref<4x8x1xf32, #tpu.memory_space<vmem>>, vector<1x8x1xf32>
    %139 = vector.shape_cast %138 : vector<1x8x1xf32> to vector<8x1xf32>
    %140 = vector.shape_cast %137 : vector<8x1xf32> to vector<1x8x1xf32>
    tpu.vector_store %arg10[%c3_80, %c0_81, %c0_82], %140 {strides = array<i32>} : memref<4x8x1xf32, #tpu.memory_space<vmem>>, vector<1x8x1xf32>,
    %c3_83 = arith.constant 3 : index
    %c0_84 = arith.constant 0 : index
    %c0_85 = arith.constant 0 : index
    %141 = vector.load %arg11[%c3_83, %c0_84, %c0_85] : memref<4x8x8xf32, #tpu.memory_space<vmem>>, vector<1x8x8xf32>
    %142 = vector.shape_cast %141 : vector<1x8x8xf32> to vector<8x8xf32>
    %143 = vector.broadcast %128 : vector<8x1xf32> to vector<8x8xf32>
    %144 = arith.mulf %143, %142 : vector<8x8xf32>
    %cst_86 = arith.constant dense<0.000000e+00> : vector<8x8xf32>
    %145 = tpu.matmul %131, %119, %cst_86 {dimension_numbers = #tpu.dot_dimension_numbers<[1], [0], [0], [1], [0, 0, 1, 1], [], []>} : vector<8x8xf32>, vector<8x8xf32>, vector<8x8xf32> -> vector<8x8xf32>
    %146 = arith.addf %144, %145 : vector<8x8xf32>
    %c3_87 = arith.constant 3 : index
    %c0_88 = arith.constant 0 : index
    %c0_89 = arith.constant 0 : index
    %147 = vector.load %arg11[%c3_87, %c0_88, %c0_89] : memref<4x8x8xf32, #tpu.memory_space<vmem>>, vector<1x8x8xf32>
    %148 = vector.shape_cast %147 : vector<1x8x8xf32> to vector<8x8xf32>
    %149 = vector.shape_cast %146 : vector<8x8xf32> to vector<1x8x8xf32>
    tpu.vector_store %arg11[%c3_87, %c0_88, %c0_89], %149 {strides = array<i32>} : memref<4x8x8xf32, #tpu.memory_space<vmem>>, vector<1x8x8xf32>,
    %c3_90 = arith.constant 3 : index
    %c0_91 = arith.constant 0 : index
    %c0_92 = arith.constant 0 : index
    %150 = vector.load %arg9[%c3_90, %c0_91, %c0_92] : memref<4x8x1xf32, #tpu.memory_space<vmem>>, vector<1x8x1xf32>
    %151 = vector.shape_cast %150 : vector<1x8x1xf32> to vector<8x1xf32>
    %152 = vector.shape_cast %126 : vector<8x1xf32> to vector<1x8x1xf32>
    tpu.vector_store %arg9[%c3_90, %c0_91, %c0_92], %152 {strides = array<i32>} : memref<4x8x1xf32, #tpu.memory_space<vmem>>, vector<1x8x1xf32>,
    %c0_i32_93 = arith.constant 0 : i32
    %153 = arith.cmpi eq, %arg2, %c0_i32_93 : i32
    %154 = arith.extui %153 : i1 to i32
    %c0_i32_94 = arith.constant 0 : i32
    %155 = arith.cmpi ne, %154, %c0_i32_94 : i32
    scf.if %155 {
      %c0_95 = arith.constant 0 : index
      %c0_96 = arith.constant 0 : index
      %c0_97 = arith.constant 0 : index
      %156 = vector.load %arg10[%c0_95, %c0_96, %c0_97] : memref<4x8x1xf32, #tpu.memory_space<vmem>>, vector<1x8x1xf32>
      %157 = vector.shape_cast %156 : vector<1x8x1xf32> to vector<8x1xf32>
      %158 = tpu.reciprocal %157 {approx = true} : vector<8x1xf32> -> vector<8x1xf32>
      %159 = arith.mulf %157, %158 : vector<8x1xf32>
      %cst_98 = arith.constant 2.000000e+00 : f32
      %160 = vector.broadcast %cst_98 : f32 to vector<8x1xf32>
      %161 = arith.subf %160, %159 : vector<8x1xf32>
      %162 = arith.mulf %158, %161 : vector<8x1xf32>
      %c0_99 = arith.constant 0 : index
      %c0_100 = arith.constant 0 : index
      %c0_101 = arith.constant 0 : index
      %163 = vector.load %arg11[%c0_99, %c0_100, %c0_101] : memref<4x8x8xf32, #tpu.memory_space<vmem>>, vector<1x8x8xf32>
      %164 = vector.shape_cast %163 : vector<1x8x8xf32> to vector<8x8xf32>
      %165 = vector.broadcast %162 : vector<8x1xf32> to vector<8x8xf32>
      %166 = arith.mulf %164, %165 : vector<8x8xf32>
      %c1_102 = arith.constant 1 : index
      %c0_103 = arith.constant 0 : index
      %c0_104 = arith.constant 0 : index
      %167 = vector.load %arg10[%c1_102, %c0_103, %c0_104] : memref<4x8x1xf32, #tpu.memory_space<vmem>>, vector<1x8x1xf32>
      %168 = vector.shape_cast %167 : vector<1x8x1xf32> to vector<8x1xf32>
      %169 = tpu.reciprocal %168 {approx = true} : vector<8x1xf32> -> vector<8x1xf32>
      %170 = arith.mulf %168, %169 : vector<8x1xf32>
      %cst_105 = arith.constant 2.000000e+00 : f32
      %171 = vector.broadcast %cst_105 : f32 to vector<8x1xf32>
      %172 = arith.subf %171, %170 : vector<8x1xf32>
      %173 = arith.mulf %169, %172 : vector<8x1xf32>
      %c1_106 = arith.constant 1 : index
      %c0_107 = arith.constant 0 : index
      %c0_108 = arith.constant 0 : index
      %174 = vector.load %arg11[%c1_106, %c0_107, %c0_108] : memref<4x8x8xf32, #tpu.memory_space<vmem>>, vector<1x8x8xf32>
      %175 = vector.shape_cast %174 : vector<1x8x8xf32> to vector<8x8xf32>
      %176 = vector.broadcast %173 : vector<8x1xf32> to vector<8x8xf32>
      %177 = arith.mulf %175, %176 : vector<8x8xf32>
      %c2_109 = arith.constant 2 : index
      %c0_110 = arith.constant 0 : index
      %c0_111 = arith.constant 0 : index
      %178 = vector.load %arg10[%c2_109, %c0_110, %c0_111] : memref<4x8x1xf32, #tpu.memory_space<vmem>>, vector<1x8x1xf32>
      %179 = vector.shape_cast %178 : vector<1x8x1xf32> to vector<8x1xf32>
      %180 = tpu.reciprocal %179 {approx = true} : vector<8x1xf32> -> vector<8x1xf32>
      %181 = arith.mulf %179, %180 : vector<8x1xf32>
      %cst_112 = arith.constant 2.000000e+00 : f32
      %182 = vector.broadcast %cst_112 : f32 to vector<8x1xf32>
      %183 = arith.subf %182, %181 : vector<8x1xf32>
      %184 = arith.mulf %180, %183 : vector<8x1xf32>
      %c2_113 = arith.constant 2 : index
      %c0_114 = arith.constant 0 : index
      %c0_115 = arith.constant 0 : index
      %185 = vector.load %arg11[%c2_113, %c0_114, %c0_115] : memref<4x8x8xf32, #tpu.memory_space<vmem>>, vector<1x8x8xf32>
      %186 = vector.shape_cast %185 : vector<1x8x8xf32> to vector<8x8xf32>
      %187 = vector.broadcast %184 : vector<8x1xf32> to vector<8x8xf32>
      %188 = arith.mulf %186, %187 : vector<8x8xf32>
      %c3_116 = arith.constant 3 : index
      %c0_117 = arith.constant 0 : index
      %c0_118 = arith.constant 0 : index
      %189 = vector.load %arg10[%c3_116, %c0_117, %c0_118] : memref<4x8x1xf32, #tpu.memory_space<vmem>>, vector<1x8x1xf32>
      %190 = vector.shape_cast %189 : vector<1x8x1xf32> to vector<8x1xf32>
      %191 = tpu.reciprocal %190 {approx = true} : vector<8x1xf32> -> vector<8x1xf32>
      %192 = arith.mulf %190, %191 : vector<8x1xf32>
      %cst_119 = arith.constant 2.000000e+00 : f32
      %193 = vector.broadcast %cst_119 : f32 to vector<8x1xf32>
      %194 = arith.subf %193, %192 : vector<8x1xf32>
      %195 = arith.mulf %191, %194 : vector<8x1xf32>
      %c3_120 = arith.constant 3 : index
      %c0_121 = arith.constant 0 : index
      %c0_122 = arith.constant 0 : index
      %196 = vector.load %arg11[%c3_120, %c0_121, %c0_122] : memref<4x8x8xf32, #tpu.memory_space<vmem>>, vector<1x8x8xf32>
      %197 = vector.shape_cast %196 : vector<1x8x8xf32> to vector<8x8xf32>
      %198 = vector.broadcast %195 : vector<8x1xf32> to vector<8x8xf32>
      %199 = arith.mulf %197, %198 : vector<8x8xf32>
      %200 = tpu.concatenate %166, %177, %188, %199 in 1 : vector<8x8xf32>, vector<8x8xf32>, vector<8x8xf32>, vector<8x8xf32> -> vector<8x32xf32>
      %c0_123 = arith.constant 0 : index
      %c0_124 = arith.constant 0 : index
      %201 = vector.load %arg6[%c0_123, %c0_124] : memref<32x32xf32, #tpu.memory_space<vmem>>, vector<32x32xf32>
      %cst_125 = arith.constant dense<0.000000e+00> : vector<8x32xf32>
      %202 = tpu.matmul %200, %201, %cst_125 {dimension_numbers = #tpu.dot_dimension_numbers<[1], [0], [0], [1], [0, 0, 1, 1], [], []>} : vector<8x32xf32>, vector<32x32xf32>, vector<8x32xf32> -> vector<8x32xf32>
      %c0_126 = arith.constant 0 : index
      %c0_127 = arith.constant 0 : index
      %203 = vector.load %arg7[%c0_126, %c0_127] : memref<1x32xf32, #tpu.memory_space<vmem>>, vector<1x32xf32>
      %204 = vector.broadcast %203 : vector<1x32xf32> to vector<8x32xf32>
      %205 = arith.addf %202, %204 : vector<8x32xf32>
      %c0_128 = arith.constant 0 : index
      %c0_129 = arith.constant 0 : index
      %c0_130 = arith.constant 0 : index
      %206 = vector.load %arg8[%c0_128, %c0_129, %c0_130] : memref<1x8x32xf32, #tpu.memory_space<vmem>>, vector<1x8x32xf32>
      %207 = vector.shape_cast %206 : vector<1x8x32xf32> to vector<8x32xf32>
      %208 = vector.shape_cast %205 : vector<8x32xf32> to vector<1x8x32xf32>
      tpu.vector_store %arg8[%c0_128, %c0_129, %c0_130], %208 {strides = array<i32>} : memref<1x8x32xf32, #tpu.memory_space<vmem>>, vector<1x8x32xf32>,
    } else {
    }
    return
  }
  func.func @transform_0(%arg0: i32, %arg1: i32, %arg2: i32) -> (i32, i32, i32) {
    %c0_i32 = arith.constant 0 : i32
    %c0_i32_0 = arith.constant 0 : i32
    return %arg0, %arg1, %c0_i32 : i32, i32, i32
  }
  func.func @transform_1(%arg0: i32, %arg1: i32, %arg2: i32) -> (i32, i32, i32) {
    %c0_i32 = arith.constant 0 : i32
    %c0_i32_0 = arith.constant 0 : i32
    return %arg0, %arg2, %c0_i32 : i32, i32, i32
  }
  func.func @transform_2(%arg0: i32, %arg1: i32, %arg2: i32) -> (i32, i32, i32) {
    %c0_i32 = arith.constant 0 : i32
    %c0_i32_0 = arith.constant 0 : i32
    return %arg0, %arg2, %c0_i32 : i32, i32, i32
  }
  func.func @transform_3(%arg0: i32, %arg1: i32, %arg2: i32) -> (i32, i32) {
    %c0_i32 = arith.constant 0 : i32
    %c0_i32_0 = arith.constant 0 : i32
    %c0_i32_1 = arith.constant 0 : i32
    return %c0_i32, %c0_i32_0 : i32, i32
  }
  func.func @transform_4(%arg0: i32, %arg1: i32, %arg2: i32) -> (i32, i32) {
    %c0_i32 = arith.constant 0 : i32
    %c0_i32_0 = arith.constant 0 : i32
    %c0_i32_1 = arith.constant 0 : i32
    return %c0_i32, %c0_i32_0 : i32, i32
  }
  func.func @transform_5(%arg0: i32, %arg1: i32, %arg2: i32) -> (i32, i32, i32) {
    %c0_i32 = arith.constant 0 : i32
    %c0_i32_0 = arith.constant 0 : i32
    return %arg0, %arg1, %c0_i32 : i32, i32, i32
  }
}

</mosaic_0001>

<llo_original>
// kernel: _forward.4
$region0: #{_forward.4}
  #allocation0 [shape = 'u32[]', space=smem, size = 0x4, offset = 0x4, fixed_abs, tag = 'smem constant byte address 0x4 - core index']
  #allocation1 [shape = 'u32[72,128]{1,0:T(1,128)}', space=vmem, size = 0x9000, scoped, tag = 'internal scratch']
  #allocation2 [shape = 'f32[16,32]{1,0:T(8,128)}', space=vmem, size = 0x2000, scoped, tag = 'scratch operand']
  %s0 = inlined_call_operand.vmem [shape: f32[16,32], index: 0, kind: input, shape index: {}]
  %s1 = inlined_call_operand.vmem [shape: f32[32,32], index: 1, kind: input, shape index: {}]
  %s2 = inlined_call_operand.vmem [shape: f32[1,32], index: 2, kind: input, shape index: {}]
  %s3 = inlined_call_operand.vmem [shape: f32[16,32], index: 3, kind: output, shape index: {}]
  %s4 = sld [smem:[#allocation0]]
  $region30: #{_forward.4} parent=0
    _
  %s6 = ssub.s32 1, %s4
  %s7 = scalar_select 0, %s6, %s4
  // Predicated region
  $region2: #{_forward.4} parent=0 // pred_check
    _
  $region3: #{_forward.4} parent=0 // pred_check_branch
    %9 = sbr.rel (0) target = $region5
  $region4: #{_forward.4} parent=0 // pred_region
    _
  $region5: #{_forward.4} parent=0 // pred_fallthru
    _
  // Predicated region
  $region6: #{_forward.4} parent=0 // pred_check
    _
  $region7: #{_forward.4} parent=0 // pred_check_branch
    %11 = sbr.rel (0) target = $region9
  $region8: #{_forward.4} parent=0 // pred_region
    _
  $region9: #{_forward.4} parent=0 // pred_fallthru
    _
  // Predicated region
  $region10: #{_forward.4} parent=0 // pred_check
    _
  $region11: #{_forward.4} parent=0 // pred_check_branch
    %13 = sbr.rel (0) target = $region13
  $region12: #{_forward.4} parent=0 // pred_region
    _
  $region13: #{_forward.4} parent=0 // pred_fallthru
    _
  %p14 = scmp.eq.s32.totalorder 0, 0
  // Predicated region
  $region14: #{_forward.4} parent=0 // pred_check
    %p15 = pneg %p14
  $region15: #{_forward.4} parent=0 // pred_check_branch
    %17 = sbr.rel (%p15) target = $region17
  $region16: #{_forward.4} parent=0 // pred_region
    %vm18 = vcmask 261120
    %19 = vst.msk [vmem:[#allocation2] sm:$0xff] %vm18, 0.0
    %20 = vst.msk [vmem:[#allocation2 + $0x8] sm:$0xff] %vm18, 0.0
  $region17: #{_forward.4} parent=0 // pred_fallthru
    _
  %v21 = vld [vmem:[#allocation2] sm:$0xff]
  %v22 = vld [vmem:[#allocation2 + $0x8] sm:$0xff]
  %v23 = vld [vmem:[%s0] sm:$0xff]
  %v24 = vld [vmem:[%s0 + $0x8] sm:$0xff]
  %v25 = vld [vmem:[%s1] sm:$0xff]
  %v26 = vld [vmem:[%s1 + $0x8] sm:$0xff]
  %v27 = vld [vmem:[%s1 + $0x10] sm:$0xff]
  %v28 = vld [vmem:[%s1 + $0x18] sm:$0xff]
  %vm29 = vcmask 261120
  %v31 = vsel %vm29, %v23, 0
  %v34 = vsel %vm29, %v24, 0
  %36 = vmatpush.msra.mxu0 0.0
  %37 = vmatpush.msra.mxu0 0.0
  %38 = vmatpush.msra.mxu0 0.0
  %39 = vmatpush.msra.mxu0 0.0
  %40 = vmatpush.msra.mxu0 0.0
  %41 = vmatpush.msra.mxu0 0.0
  %42 = vmatpush.msra.mxu0 0.0
  %43 = vmatpush.msra.mxu0 0.0
  %44 = vmatpush.msra.mxu0 0.0
  %45 = vmatpush.msra.mxu0 0.0
  %46 = vmatpush.msra.mxu0 0.0
  %47 = vmatpush.msra.mxu0 0.0
  %48 = vmatpush.msra.mxu0 %v28
  %49 = vmatpush.msra.mxu0 %v27
  %50 = vmatpush.msra.mxu0 %v26
  %51 = vmatpush.msra.mxu0 %v25
  %52 = vmatmul.f32.gmra.mxu0 %v31
  %v53 = vpop.f32.mrf.mxu0
  %v54 = vadd.f32 0.0, %v53
  %55 = vmatmul.f32.gmra.mxu0 %v34
  %v56 = vpop.f32.mrf.mxu0
  %v57 = vadd.f32 0.0, %v56
  %58 = vdwg.mxu0
  %v59 = vadd.f32 %v21, %v54
  %v60 = vadd.f32 %v22, %v57
  %61 = vst.msk [vmem:[#allocation2] sm:$0xff] %vm29, %v59
  %62 = vst.msk [vmem:[#allocation2 + $0x8] sm:$0xff] %vm29, %v60
  // Predicated region
  $region18: #{_forward.4} parent=0 // pred_check
    %p63 = pneg %p14
  $region19: #{_forward.4} parent=0 // pred_check_branch
    %65 = sbr.rel (%p63) target = $region21
  $region20: #{_forward.4} parent=0 // pred_region
    %v66 = vld [vmem:[#allocation2] sm:$0xff]
    %v67 = vld [vmem:[#allocation2 + $0x8] sm:$0xff]
    %v68 = vld [vmem:[%s2] sm:$0x1]
    %v70 = vperm.slane %v68, 0
    %v72 = vadd.f32 %v66, %v70
    %v73 = vadd.f32 %v67, %v70
    %74 = vst.msk [vmem:[%s3] sm:$0xff] %vm29, %v72
    %75 = vst.msk [vmem:[%s3 + $0x8] sm:$0xff] %vm29, %v73
  $region21: #{_forward.4} parent=0 // pred_fallthru
    _
  // Predicated region
  $region22: #{_forward.4} parent=0 // pred_check
    _
  $region23: #{_forward.4} parent=0 // pred_check_branch
    %77 = sbr.rel (0) target = $region25
  $region24: #{_forward.4} parent=0 // pred_region
    _
  $region25: #{_forward.4} parent=0 // pred_fallthru
    _
  // Predicated region
  $region26: #{_forward.4} parent=0 // pred_check
    _
  $region27: #{_forward.4} parent=0 // pred_check_branch
    %79 = sbr.rel (0) target = $region29
  $region28: #{_forward.4} parent=0 // pred_region
    _
  $region29: #{_forward.4} parent=0 // pred_fallthru
    _

// kernel: _forward.7
$region0: #{_forward.7}
  #allocation0 [shape = 'u32[]', space=smem, size = 0x4, offset = 0x4, fixed_abs, tag = 'smem constant byte address 0x4 - core index']
  #allocation1 [shape = 'u32[72,128]{1,0:T(1,128)}', space=vmem, size = 0x9000, scoped, tag = 'internal scratch']
  #allocation2 [shape = 'f32[4,8,1]{2,1,0:T(8,128)}', space=vmem, size = 0x4000, scoped, tag = 'scratch operand']
  #allocation3 [shape = 'f32[4,8,1]{2,1,0:T(8,128)}', space=vmem, size = 0x4000, scoped, tag = 'scratch operand']
  #allocation4 [shape = 'f32[4,8,8]{2,1,0:T(8,128)}', space=vmem, size = 0x4000, scoped, tag = 'scratch operand']
  %s0 = inlined_call_operand.vmem [shape: f32[2,8,32], index: 0, kind: input, shape index: {}]
  %s1 = inlined_call_operand.vmem [shape: f32[2,8,32], index: 1, kind: input, shape index: {}]
  %s2 = inlined_call_operand.vmem [shape: f32[2,8,32], index: 2, kind: input, shape index: {}]
  %s3 = inlined_call_operand.vmem [shape: f32[32,32], index: 3, kind: input, shape index: {}]
  %s4 = inlined_call_operand.vmem [shape: f32[1,32], index: 4, kind: input, shape index: {}]
  %s5 = inlined_call_operand.vmem [shape: f32[2,8,32], index: 5, kind: output, shape index: {}]
  %s6 = sld [smem:[#allocation0]]
  $region61: #{_forward.7} parent=0
    _
  %s8 = ssub.s32 1, %s6
  %s9 = scalar_select 0, %s8, %s6
  loop: start=0, step=1, limit=4
  $region2: #{_forward.7} parent=0 // loop_pre_header
    _
  $region3: #{_forward.7} parent=0 // loop_header
    %s11 = sphi 0, %s15
    %p12 = scmp.ge.s32.totalorder %s11, 4
    %s18 = sphi 0, %s37
    %s19 = sphi 0, %s33
    %s20 = sphi 0, %s29
    %s21 = sphi 0, %s18
    %s22 = sphi 0, %s19
    %s23 = sphi 0, %s20
    %s24 = sphi 0, %s21
    %s25 = sphi 0, %s22
    %s26 = sphi 0, %s23
    %s42 = sphi 0, %s44
    %s45 = sphi 0, %s42
    %s46 = sphi 0, %s45
    %s62 = sphi 0, %s46
    %s70 = sphi 0, %s72
    %s73 = sphi 0, %s70
    %s74 = sphi 0, %s73
    %s90 = sphi 0, %s74
    %s98 = sphi 0, %s100
    %s101 = sphi 0, %s98
    %s102 = sphi 0, %s101
    %s118 = sphi 0, %s102
    %s122 = sphi 0, %s122
    %s124 = sphi 0, %s122
    %s125 = sphi 0, %s124
    %s139 = sphi 0, %s125
    %s143 = sphi 0, %s143
    %s145 = sphi 0, %s143
    %s146 = sphi 0, %s145
    %s160 = sphi 0, %s146
    %s168 = sphi 0, %s170
    %s171 = sphi 0, %s168
    %s172 = sphi 0, %s171
    %s188 = sphi 0, %s172
  $region4: #{_forward.7} parent=0 // loop_header_branch
    %14 = sbr.rel (%p12) target = $region8
  $region5: #{_forward.7} parent=0 // loop_body
    %s16 = ssub.s32 %s11, 1
    %s17 = ssub.s32 %s11, 2
    %s27 = sadd.s32 1, %s20
    %p28 = scmp.ge.s32.totalorder %s27, 1
    %s29 = scalar_select %p28, 0, %s27
    %s30 = sadd.s32 1, %s19
    %s31 = scalar_select %p28, %s30, %s19
    %p32 = scmp.ge.s32.totalorder %s31, 1
    %s33 = scalar_select %p32, 0, %s31
    %s34 = sadd.s32 1, %s18
    %s35 = scalar_select %p32, %s34, %s18
    %p36 = scmp.ge.s32.totalorder %s35, 2
    %s37 = scalar_select %p36, 0, %s35
    %s38 = ssub.s32 %s18, %s37
    %s39 = ssub.s32 %s19, %s33
    %s40 = sor.u32 %s38, %s39
    %p41 = scmp.eq.s32.totalorder %s40, 0
    %s43 = sadd.s32 %s42, 1
    %s44 = scalar_select %p41, %s42, %s43
    %p47 = pneg %p41
    %p48 = scmp.eq.s32.totalorder %s11, 1
    %p49 = por %p47, %p48
    %p50 = scmp.ne.s32.totalorder %s42, %s45
    %p51 = scmp.eq.s32.totalorder %s11, 0
    %p52 = por %p50, %p51
    %p53 = scmp.ne.s32.totalorder %s42, %s45
    %p54 = scmp.eq.s32.totalorder %s16, 1
    %p55 = por %p53, %p54
    %p56 = scmp.ne.s32.totalorder %s45, %s46
    %p57 = scmp.eq.s32.totalorder %s16, 0
    %p58 = por %p56, %p57
    %p59 = scmp.ne.s32.totalorder %s45, %s46
    %p60 = scmp.eq.s32.totalorder %s17, 1
    %p61 = por %p59, %p60
    %p63 = scmp.ne.s32.totalorder %s46, %s62
    %p64 = scmp.eq.s32.totalorder %s17, 0
    %p65 = por %p63, %p64
    %s66 = ssub.s32 %s18, %s37
    %s67 = ssub.s32 %s20, %s29
    %s68 = sor.u32 %s66, %s67
    %p69 = scmp.eq.s32.totalorder %s68, 0
    %s71 = sadd.s32 %s70, 1
    %s72 = scalar_select %p69, %s70, %s71
    %p75 = pneg %p69
    %p76 = scmp.eq.s32.totalorder %s11, 1
    %p77 = por %p75, %p76
    %p78 = scmp.ne.s32.totalorder %s70, %s73
    %p79 = scmp.eq.s32.totalorder %s11, 0
    %p80 = por %p78, %p79
    %p81 = scmp.ne.s32.totalorder %s70, %s73
    %p82 = scmp.eq.s32.totalorder %s16, 1
    %p83 = por %p81, %p82
    %p84 = scmp.ne.s32.totalorder %s73, %s74
    %p85 = scmp.eq.s32.totalorder %s16, 0
    %p86 = por %p84, %p85
    %p87 = scmp.ne.s32.totalorder %s73, %s74
    %p88 = scmp.eq.s32.totalorder %s17, 1
    %p89 = por %p87, %p88
    %p91 = scmp.ne.s32.totalorder %s74, %s90
    %p92 = scmp.eq.s32.totalorder %s17, 0
    %p93 = por %p91, %p92
    %s94 = ssub.s32 %s18, %s37
    %s95 = ssub.s32 %s20, %s29
    %s96 = sor.u32 %s94, %s95
    %p97 = scmp.eq.s32.totalorder %s96, 0
    %s99 = sadd.s32 %s98, 1
    %s100 = scalar_select %p97, %s98, %s99
    %p103 = pneg %p97
    %p104 = scmp.eq.s32.totalorder %s11, 1
    %p105 = por %p103, %p104
    %p106 = scmp.ne.s32.totalorder %s98, %s101
    %p107 = scmp.eq.s32.totalorder %s11, 0
    %p108 = por %p106, %p107
    %p109 = scmp.ne.s32.totalorder %s98, %s101
    %p110 = scmp.eq.s32.totalorder %s16, 1
    %p111 = por %p109, %p110
    %p112 = scmp.ne.s32.totalorder %s101, %s102
    %p113 = scmp.eq.s32.totalorder %s16, 0
    %p114 = por %p112, %p113
    %p115 = scmp.ne.s32.totalorder %s101, %s102
    %p116 = scmp.eq.s32.totalorder %s17, 1
    %p117 = por %p115, %p116
    %p119 = scmp.ne.s32.totalorder %s102, %s118
    %p120 = scmp.eq.s32.totalorder %s17, 0
    %p121 = por %p119, %p120
    %s123 = sadd.s32 %s122, 1
    %p126 = scmp.eq.s32.totalorder %s11, 1
    %p127 = scmp.ne.s32.totalorder %s122, %s124
    %p128 = scmp.eq.s32.totalorder %s11, 0
    %p129 = por %p127, %p128
    %p130 = scmp.ne.s32.totalorder %s122, %s124
    %p131 = scmp.eq.s32.totalorder %s16, 1
    %p132 = por %p130, %p131
    %p133 = scmp.ne.s32.totalorder %s124, %s125
    %p134 = scmp.eq.s32.totalorder %s16, 0
    %p135 = por %p133, %p134
    %p136 = scmp.ne.s32.totalorder %s124, %s125
    %p137 = scmp.eq.s32.totalorder %s17, 1
    %p138 = por %p136, %p137
    %p140 = scmp.ne.s32.totalorder %s125, %s139
    %p141 = scmp.eq.s32.totalorder %s17, 0
    %p142 = por %p140, %p141
    %s144 = sadd.s32 %s143, 1
    %p147 = scmp.eq.s32.totalorder %s11, 1
    %p148 = scmp.ne.s32.totalorder %s143, %s145
    %p149 = scmp.eq.s32.totalorder %s11, 0
    %p150 = por %p148, %p149
    %p151 = scmp.ne.s32.totalorder %s143, %s145
    %p152 = scmp.eq.s32.totalorder %s16, 1
    %p153 = por %p151, %p152
    %p154 = scmp.ne.s32.totalorder %s145, %s146
    %p155 = scmp.eq.s32.totalorder %s16, 0
    %p156 = por %p154, %p155
    %p157 = scmp.ne.s32.totalorder %s145, %s146
    %p158 = scmp.eq.s32.totalorder %s17, 1
    %p159 = por %p157, %p158
    %p161 = scmp.ne.s32.totalorder %s146, %s160
    %p162 = scmp.eq.s32.totalorder %s17, 0
    %p163 = por %p161, %p162
    %s164 = ssub.s32 %s18, %s37
    %s165 = ssub.s32 %s19, %s33
    %s166 = sor.u32 %s164, %s165
    %p167 = scmp.eq.s32.totalorder %s166, 0
    %s169 = sadd.s32 %s168, 1
    %s170 = scalar_select %p167, %s168, %s169
    %p173 = pneg %p167
    %p174 = scmp.eq.s32.totalorder %s11, 1
    %p175 = por %p173, %p174
    %p176 = scmp.ne.s32.totalorder %s168, %s171
    %p177 = scmp.eq.s32.totalorder %s11, 0
    %p178 = por %p176, %p177
    %p179 = scmp.ne.s32.totalorder %s168, %s171
    %p180 = scmp.eq.s32.totalorder %s16, 1
    %p181 = por %p179, %p180
    %p182 = scmp.ne.s32.totalorder %s171, %s172
    %p183 = scmp.eq.s32.totalorder %s16, 0
    %p184 = por %p182, %p183
    %p185 = scmp.ne.s32.totalorder %s171, %s172
    %p186 = scmp.eq.s32.totalorder %s17, 1
    %p187 = por %p185, %p186
    %p189 = scmp.ne.s32.totalorder %s172, %s188
    %p190 = scmp.eq.s32.totalorder %s17, 0
    %p191 = por %p189, %p190
    %p192 = scmp.le.s32.totalorder 1, %s11
    %p193 = scmp.lt.s32.totalorder %s11, 3
    %p194 = pnand %p192, %p193
    %p195 = pneg %p194
    // Predicated region
    $region9: #{_forward.7} parent=5 // pred_check
      _
    $region10: #{_forward.7} parent=5 // pred_check_branch
      %197 = sbr.rel (%p194) target = $region12
    $region11: #{_forward.7} parent=5 // pred_region
      %s198 = ssub.s32 %s11, 1
      // Predicated region
      $region13: #{_forward.7} parent=11 // pred_check
        %p199 = pneg %p135
      $region14: #{_forward.7} parent=11 // pred_check_branch
        %201 = sbr.rel (%p199) target = $region16
      $region15: #{_forward.7} parent=11 // pred_region
        _
      $region16: #{_forward.7} parent=11 // pred_fallthru
        _
      // Predicated region
      $region17: #{_forward.7} parent=11 // pred_check
        %p202 = pneg %p156
      $region18: #{_forward.7} parent=11 // pred_check_branch
        %204 = sbr.rel (%p202) target = $region20
      $region19: #{_forward.7} parent=11 // pred_region
        _
      $region20: #{_forward.7} parent=11 // pred_fallthru
        _
    $region12: #{_forward.7} parent=5 // pred_fallthru
      _
    %p205 = scmp.lt.s32.totalorder %s11, 2
    // Predicated region
    $region21: #{_forward.7} parent=5 // pred_check
      %p206 = pneg %p205
    $region22: #{_forward.7} parent=5 // pred_check_branch
      %208 = sbr.rel (%p206) target = $region24
    $region23: #{_forward.7} parent=5 // pred_region
      // Predicated region
      $region25: #{_forward.7} parent=23 // pred_check
        %p209 = pneg %p52
      $region26: #{_forward.7} parent=23 // pred_check_branch
        %211 = sbr.rel (%p209) target = $region28
      $region27: #{_forward.7} parent=23 // pred_region
        %p212 = scmp.lt.s32.totalorder %s18, 1
        %s213 = scalar_select %p212, %s18, 1
        %p214 = scmp.lt.s32.totalorder %s19, 0
        %s215 = scalar_select %p214, %s19, 0
        %s216 = sadd.s32 %s215, %s213
        %s217 = smul.addr %s216, 8
        %s218 = scalar_lea.vmem %s0, %s217
      $region28: #{_forward.7} parent=23 // pred_fallthru
        _
      // Predicated region
      $region29: #{_forward.7} parent=23 // pred_check
        %p219 = pneg %p80
      $region30: #{_forward.7} parent=23 // pred_check_branch
        %221 = sbr.rel (%p219) target = $region32
      $region31: #{_forward.7} parent=23 // pred_region
        %p222 = scmp.lt.s32.totalorder %s18, 1
        %s223 = scalar_select %p222, %s18, 1
        %p224 = scmp.lt.s32.totalorder %s20, 0
        %s225 = scalar_select %p224, %s20, 0
        %s226 = sadd.s32 %s225, %s223
        %s227 = smul.addr %s226, 8
        %s228 = scalar_lea.vmem %s1, %s227
      $region32: #{_forward.7} parent=23 // pred_fallthru
        _
      // Predicated region
      $region33: #{_forward.7} parent=23 // pred_check
        %p229 = pneg %p108
      $region34: #{_forward.7} parent=23 // pred_check_branch
        %231 = sbr.rel (%p229) target = $region36
      $region35: #{_forward.7} parent=23 // pred_region
        %p232 = scmp.lt.s32.totalorder %s18, 1
        %s233 = scalar_select %p232, %s18, 1
        %p234 = scmp.lt.s32.totalorder %s20, 0
        %s235 = scalar_select %p234, %s20, 0
        %s236 = sadd.s32 %s235, %s233
        %s237 = smul.addr %s236, 8
        %s238 = scalar_lea.vmem %s2, %s237
      $region36: #{_forward.7} parent=23 // pred_fallthru
        _
    $region24: #{_forward.7} parent=5 // pred_fallthru
      _
    %p239 = scmp.le.s32.totalorder 1, %s11
    %p240 = scmp.lt.s32.totalorder %s11, 3
    %p241 = pnand %p239, %p240
    %p242 = pneg %p241
    // Predicated region
    $region37: #{_forward.7} parent=5 // pred_check
      _
    $region38: #{_forward.7} parent=5 // pred_check_branch
      %244 = sbr.rel (%p241) target = $region40
    $region39: #{_forward.7} parent=5 // pred_region
      %s245 = ssub.s32 %s11, 1
      %p246 = scmp.lt.s32.totalorder %s21, 1
      %s247 = scalar_select %p246, %s21, 1
      %p248 = scmp.lt.s32.totalorder %s22, 0
      %s249 = scalar_select %p248, %s22, 0
      %s250 = sadd.s32 %s249, %s247
      %s251 = smul.addr %s250, 8
      %s252 = scalar_lea.vmem %s0, %s251
      %p253 = pneg %p58
      %p254 = pneg %p55
      %p255 = scmp.lt.s32.totalorder %s21, 1
      %s256 = scalar_select %p255, %s21, 1
      %p257 = scmp.lt.s32.totalorder %s23, 0
      %s258 = scalar_select %p257, %s23, 0
      %s259 = sadd.s32 %s258, %s256
      %s260 = smul.addr %s259, 8
      %s261 = scalar_lea.vmem %s1, %s260
      %p262 = pneg %p86
      %p263 = pneg %p83
      %p264 = scmp.lt.s32.totalorder %s21, 1
      %s265 = scalar_select %p264, %s21, 1
      %p266 = scmp.lt.s32.totalorder %s23, 0
      %s267 = scalar_select %p266, %s23, 0
      %s268 = sadd.s32 %s267, %s265
      %s269 = smul.addr %s268, 8
      %s270 = scalar_lea.vmem %s2, %s269
      %p271 = pneg %p114
      %p272 = pneg %p111
      %p273 = pneg %p135
      %p274 = pneg %p132
      %p275 = pneg %p156
      %p276 = pneg %p153
      %p277 = pneg %p184
      %p278 = pneg %p181
      %p279 = scmp.lt.s32.totalorder %s21, 1
      %s280 = scalar_select %p279, %s21, 1
      %p281 = scmp.lt.s32.totalorder %s22, 0
      %s282 = scalar_select %p281, %s22, 0
      %s283 = sadd.s32 %s282, %s280
      %s284 = smul.addr %s283, 8
      %s285 = scalar_lea.vmem %s5, %s284
      %p286 = scmp.lt.s32.totalorder %s21, 1
      %s287 = scalar_select %p286, %s21, 1
      %p288 = scmp.lt.s32.totalorder %s22, 0
      %s289 = scalar_select %p288, %s22, 0
      %s290 = sadd.s32 %s289, %s287
      %s291 = smul.addr %s290, 8
      %s292 = scalar_lea.vmem %s0, %s291
      %p293 = scmp.lt.s32.totalorder %s21, 1
      %s294 = scalar_select %p293, %s21, 1
      %p295 = scmp.lt.s32.totalorder %s23, 0
      %s296 = scalar_select %p295, %s23, 0
      %s297 = sadd.s32 %s296, %s294
      %s298 = smul.addr %s297, 8
      %s299 = scalar_lea.vmem %s1, %s298
      %p300 = scmp.lt.s32.totalorder %s21, 1
      %s301 = scalar_select %p300, %s21, 1
      %p302 = scmp.lt.s32.totalorder %s23, 0
      %s303 = scalar_select %p302, %s23, 0
      %s304 = sadd.s32 %s303, %s301
      %s305 = smul.addr %s304, 8
      %s306 = scalar_lea.vmem %s2, %s305
      %p307 = scmp.lt.s32.totalorder %s21, 1
      %s308 = scalar_select %p307, %s21, 1
      %p309 = scmp.lt.s32.totalorder %s22, 0
      %s310 = scalar_select %p309, %s22, 0
      %s311 = sadd.s32 %s310, %s308
      %s312 = smul.addr %s311, 8
      %s313 = scalar_lea.vmem %s5, %s312
      %p314 = scmp.eq.s32.totalorder %s23, 0
      // Predicated region
      $region41: #{_forward.7} parent=39 // pred_check
        %p315 = pneg %p314
      $region42: #{_forward.7} parent=39 // pred_check_branch
        %317 = sbr.rel (%p315) target = $region44
      $region43: #{_forward.7} parent=39 // pred_region
        %vm318 = vcmask 7168
        %319 = vst.msk [vmem:[#allocation2] sm:$0xff] %vm318, -inf
        %320 = vst.msk [vmem:[#allocation2 + $0x8] sm:$0xff] %vm318, -inf
        %321 = vst.msk [vmem:[#allocation2 + $0x10] sm:$0xff] %vm318, -inf
        %322 = vst.msk [vmem:[#allocation2 + $0x18] sm:$0xff] %vm318, -inf
        %323 = vst.msk [vmem:[#allocation3] sm:$0xff] %vm318, 0.0
        %324 = vst.msk [vmem:[#allocation3 + $0x8] sm:$0xff] %vm318, 0.0
        %325 = vst.msk [vmem:[#allocation3 + $0x10] sm:$0xff] %vm318, 0.0
        %326 = vst.msk [vmem:[#allocation3 + $0x18] sm:$0xff] %vm318, 0.0
        %vm327 = vcmask 64512
        %328 = vst.msk [vmem:[#allocation4] sm:$0xff] %vm327, 0.0
        %329 = vst.msk [vmem:[#allocation4 + $0x8] sm:$0xff] %vm327, 0.0
        %330 = vst.msk [vmem:[#allocation4 + $0x10] sm:$0xff] %vm327, 0.0
        %331 = vst.msk [vmem:[#allocation4 + $0x18] sm:$0xff] %vm327, 0.0
      $region44: #{_forward.7} parent=39 // pred_fallthru
        _
      %v332 = vld [vmem:[%s292] sm:$0xff]
      %v333 = vld [vmem:[%s299] sm:$0xff]
      %v334 = vld [vmem:[%s306] sm:$0xff]
      %vm335 = vcmask 64512
      %v337 = vsel %vm335, %v332, 0
      %v340 = vsel %vm335, %v333, 0
      %342 = vmatpush.xpose.msra.mxu0 0.0
      %343 = vmatpush.xpose.msra.mxu0 0.0
      %344 = vmatpush.xpose.msra.mxu0 0.0
      %345 = vmatpush.xpose.msra.mxu0 0.0
      %346 = vmatpush.xpose.msra.mxu0 0.0
      %347 = vmatpush.xpose.msra.mxu0 0.0
      %348 = vmatpush.xpose.msra.mxu0 0.0
      %349 = vmatpush.xpose.msra.mxu0 0.0
      %350 = vmatpush.xpose.msra.mxu0 0.0
      %351 = vmatpush.xpose.msra.mxu0 0.0
      %352 = vmatpush.xpose.msra.mxu0 0.0
      %353 = vmatpush.xpose.msra.mxu0 0.0
      %354 = vmatpush.xpose.msra.mxu0 0.0
      %355 = vmatpush.xpose.msra.mxu0 0.0
      %356 = vmatpush.xpose.msra.mxu0 0.0
      %357 = vmatpush.xpose.msra.mxu0 %v340
      %358 = vmatmul.f32.gmra.mxu0 %v337
      %v359 = vpop.f32.mrf.mxu0
      %v360 = vadd.f32 0.0, %v359
      %361 = vdwg.mxu0
      %v362 = vld [vmem:[#allocation2] sm:$0xff]
      %v363 = vsel %vm335, %v360, -inf
      %364 = vmax.xlane.f32.xlu0 %v363
      %v365 = vpop.xlane.xlu0 %364
      %v366 = vmax.f32 %v362, %v365
      %v367 = vsub.f32 %v362, %v366
      %v368 = vmul.f32 %v367, 1.442695
      %v369 = vpow.pop %v368
      %371 = vset.pattern.permute.xlu0 0
      %372 = vperm.xlu0 %371, %v366
      %v373 = vpop.permute.xlu0 %372
      %v375 = vsub.f32 %v360, %v373
      %v376 = vmul.f32 %v375, 1.442695
      %v377 = vpow.pop %v376
      %v378 = vld [vmem:[#allocation3] sm:$0xff]
      %v379 = vmul.f32 %v369, %v378
      %v380 = vsel %vm335, %v377, 0.0
      %381 = vadd.xlane.f32.xlu0 %v380
      %v382 = vpop.xlane.xlu0 %381
      %v383 = vadd.f32 %v379, %v382
      %vm384 = vcmask 7168
      %385 = vst.msk [vmem:[#allocation3] sm:$0xff] %vm384, %v383
      %v386 = vld [vmem:[#allocation4] sm:$0xff]
      %388 = vset.pattern.permute.xlu0 0
      %389 = vperm.xlu0 %388, %v369
      %v390 = vpop.permute.xlu0 %389
      %v392 = vmul.f32 %v390, %v386
      %v394 = vsel %vm335, %v377, 0
      %396 = vmatpush.msra.mxu0 0.0
      %397 = vmatpush.msra.mxu0 0.0
      %398 = vmatpush.msra.mxu0 0.0
      %399 = vmatpush.msra.mxu0 0.0
      %400 = vmatpush.msra.mxu0 0.0
      %401 = vmatpush.msra.mxu0 0.0
      %402 = vmatpush.msra.mxu0 0.0
      %403 = vmatpush.msra.mxu0 0.0
      %404 = vmatpush.msra.mxu0 0.0
      %405 = vmatpush.msra.mxu0 0.0
      %406 = vmatpush.msra.mxu0 0.0
      %407 = vmatpush.msra.mxu0 0.0
      %408 = vmatpush.msra.mxu0 0.0
      %409 = vmatpush.msra.mxu0 0.0
      %410 = vmatpush.msra.mxu0 0.0
      %411 = vmatpush.msra.mxu0 %v334
      %412 = vmatmul.f32.gmra.mxu0 %v394
      %v413 = vpop.f32.mrf.mxu0
      %v414 = vadd.f32 0.0, %v413
      %415 = vdwg.mxu0
      %v416 = vadd.f32 %v392, %v414
      %417 = vst.msk [vmem:[#allocation4] sm:$0xff] %vm335, %v416
      %418 = vst.msk [vmem:[#allocation2] sm:$0xff] %vm384, %v366
      %419 = vrot.lane.b32.xlu0 %v332, 120
      %v420 = vpop.permute.xlu0 %419
      %421 = vrot.lane.b32.xlu0 %v333, 120
      %v422 = vpop.permute.xlu0 %421
      %v423 = vsel %vm335, %v420, 0
      %v425 = vsel %vm335, %v422, 0
      %427 = vmatpush.xpose.msra.mxu0 0.0
      %428 = vmatpush.xpose.msra.mxu0 0.0
      %429 = vmatpush.xpose.msra.mxu0 0.0
      %430 = vmatpush.xpose.msra.mxu0 0.0
      %431 = vmatpush.xpose.msra.mxu0 0.0
      %432 = vmatpush.xpose.msra.mxu0 0.0
      %433 = vmatpush.xpose.msra.mxu0 0.0
      %434 = vmatpush.xpose.msra.mxu0 0.0
      %435 = vmatpush.xpose.msra.mxu0 0.0
      %436 = vmatpush.xpose.msra.mxu0 0.0
      %437 = vmatpush.xpose.msra.mxu0 0.0
      %438 = vmatpush.xpose.msra.mxu0 0.0
      %439 = vmatpush.xpose.msra.mxu0 0.0
      %440 = vmatpush.xpose.msra.mxu0 0.0
      %441 = vmatpush.xpose.msra.mxu0 0.0
      %442 = vmatpush.xpose.msra.mxu0 %v425
      %443 = vmatmul.f32.gmra.mxu0 %v423
      %v444 = vpop.f32.mrf.mxu0
      %v445 = vadd.f32 0.0, %v444
      %446 = vdwg.mxu0
      %s447 = scalar_lea.vmem [#allocation2], 8
      %v448 = vld [vmem:[%s447] sm:$0xff]
      %v449 = vsel %vm335, %v445, -inf
      %450 = vmax.xlane.f32.xlu0 %v449
      %v451 = vpop.xlane.xlu0 %450
      %v452 = vmax.f32 %v448, %v451
      %v453 = vsub.f32 %v448, %v452
      %v454 = vmul.f32 %v453, 1.442695
      %v455 = vpow.pop %v454
      %457 = vset.pattern.permute.xlu0 0
      %458 = vperm.xlu0 %457, %v452
      %v459 = vpop.permute.xlu0 %458
      %v461 = vsub.f32 %v445, %v459
      %v462 = vmul.f32 %v461, 1.442695
      %v463 = vpow.pop %v462
      %s464 = scalar_lea.vmem [#allocation3], 8
      %v465 = vld [vmem:[%s464] sm:$0xff]
      %v466 = vmul.f32 %v455, %v465
      %v467 = vsel %vm335, %v463, 0.0
      %468 = vadd.xlane.f32.xlu0 %v467
      %v469 = vpop.xlane.xlu0 %468
      %v470 = vadd.f32 %v466, %v469
      %471 = vst.msk [vmem:[%s464] sm:$0xff] %vm384, %v470
      %s472 = scalar_lea.vmem [#allocation4], 8
      %v473 = vld [vmem:[%s472] sm:$0xff]
      %475 = vset.pattern.permute.xlu0 0
      %476 = vperm.xlu0 %475, %v455
      %v477 = vpop.permute.xlu0 %476
      %v479 = vmul.f32 %v477, %v473
      %481 = vrot.lane.b32.xlu0 %v334, 120
      %v482 = vpop.permute.xlu0 %481
      %v485 = vsel %vm335, %v463, 0
      %487 = vmatpush.msra.mxu0 0.0
      %488 = vmatpush.msra.mxu0 0.0
      %489 = vmatpush.msra.mxu0 0.0
      %490 = vmatpush.msra.mxu0 0.0
      %491 = vmatpush.msra.mxu0 0.0
      %492 = vmatpush.msra.mxu0 0.0
      %493 = vmatpush.msra.mxu0 0.0
      %494 = vmatpush.msra.mxu0 0.0
      %495 = vmatpush.msra.mxu0 0.0
      %496 = vmatpush.msra.mxu0 0.0
      %497 = vmatpush.msra.mxu0 0.0
      %498 = vmatpush.msra.mxu0 0.0
      %499 = vmatpush.msra.mxu0 0.0
      %500 = vmatpush.msra.mxu0 0.0
      %501 = vmatpush.msra.mxu0 0.0
      %502 = vmatpush.msra.mxu0 %v482
      %503 = vmatmul.f32.gmra.mxu0 %v485
      %v504 = vpop.f32.mrf.mxu0
      %v505 = vadd.f32 0.0, %v504
      %506 = vdwg.mxu0
      %v507 = vadd.f32 %v479, %v505
      %508 = vst.msk [vmem:[%s472] sm:$0xff] %vm335, %v507
      %509 = vst.msk [vmem:[%s447] sm:$0xff] %vm384, %v452
      %510 = vrot.lane.b32.xlu0 %v332, 112
      %v511 = vpop.permute.xlu0 %510
      %512 = vrot.lane.b32.xlu0 %v333, 112
      %v513 = vpop.permute.xlu0 %512
      %v514 = vsel %vm335, %v511, 0
      %v516 = vsel %vm335, %v513, 0
      %518 = vmatpush.xpose.msra.mxu0 0.0
      %519 = vmatpush.xpose.msra.mxu0 0.0
      %520 = vmatpush.xpose.msra.mxu0 0.0
      %521 = vmatpush.xpose.msra.mxu0 0.0
      %522 = vmatpush.xpose.msra.mxu0 0.0
      %523 = vmatpush.xpose.msra.mxu0 0.0
      %524 = vmatpush.xpose.msra.mxu0 0.0
      %525 = vmatpush.xpose.msra.mxu0 0.0
      %526 = vmatpush.xpose.msra.mxu0 0.0
      %527 = vmatpush.xpose.msra.mxu0 0.0
      %528 = vmatpush.xpose.msra.mxu0 0.0
      %529 = vmatpush.xpose.msra.mxu0 0.0
      %530 = vmatpush.xpose.msra.mxu0 0.0
      %531 = vmatpush.xpose.msra.mxu0 0.0
      %532 = vmatpush.xpose.msra.mxu0 0.0
      %533 = vmatpush.xpose.msra.mxu0 %v516
      %534 = vmatmul.f32.gmra.mxu0 %v514
      %v535 = vpop.f32.mrf.mxu0
      %v536 = vadd.f32 0.0, %v535
      %537 = vdwg.mxu0
      %s538 = scalar_lea.vmem [#allocation2], 16
      %v539 = vld [vmem:[%s538] sm:$0xff]
      %v540 = vsel %vm335, %v536, -inf
      %541 = vmax.xlane.f32.xlu0 %v540
      %v542 = vpop.xlane.xlu0 %541
      %v543 = vmax.f32 %v539, %v542
      %v544 = vsub.f32 %v539, %v543
      %v545 = vmul.f32 %v544, 1.442695
      %v546 = vpow.pop %v545
      %548 = vset.pattern.permute.xlu0 0
      %549 = vperm.xlu0 %548, %v543
      %v550 = vpop.permute.xlu0 %549
      %v552 = vsub.f32 %v536, %v550
      %v553 = vmul.f32 %v552, 1.442695
      %v554 = vpow.pop %v553
      %s555 = scalar_lea.vmem [#allocation3], 16
      %v556 = vld [vmem:[%s555] sm:$0xff]
      %v557 = vmul.f32 %v546, %v556
      %v558 = vsel %vm335, %v554, 0.0
      %559 = vadd.xlane.f32.xlu0 %v558
      %v560 = vpop.xlane.xlu0 %559
      %v561 = vadd.f32 %v557, %v560
      %562 = vst.msk [vmem:[%s555] sm:$0xff] %vm384, %v561
      %s563 = scalar_lea.vmem [#allocation4], 16
      %v564 = vld [vmem:[%s563] sm:$0xff]
      %566 = vset.pattern.permute.xlu0 0
      %567 = vperm.xlu0 %566, %v546
      %v568 = vpop.permute.xlu0 %567
      %v570 = vmul.f32 %v568, %v564
      %571 = vrot.lane.b32.xlu0 %v334, 112
      %v572 = vpop.permute.xlu0 %571
      %v575 = vsel %vm335, %v554, 0
      %577 = vmatpush.msra.mxu0 0.0
      %578 = vmatpush.msra.mxu0 0.0
      %579 = vmatpush.msra.mxu0 0.0
      %580 = vmatpush.msra.mxu0 0.0
      %581 = vmatpush.msra.mxu0 0.0
      %582 = vmatpush.msra.mxu0 0.0
      %583 = vmatpush.msra.mxu0 0.0
      %584 = vmatpush.msra.mxu0 0.0
      %585 = vmatpush.msra.mxu0 0.0
      %586 = vmatpush.msra.mxu0 0.0
      %587 = vmatpush.msra.mxu0 0.0
      %588 = vmatpush.msra.mxu0 0.0
      %589 = vmatpush.msra.mxu0 0.0
      %590 = vmatpush.msra.mxu0 0.0
      %591 = vmatpush.msra.mxu0 0.0
      %592 = vmatpush.msra.mxu0 %v572
      %593 = vmatmul.f32.gmra.mxu0 %v575
      %v594 = vpop.f32.mrf.mxu0
      %v595 = vadd.f32 0.0, %v594
      %596 = vdwg.mxu0
      %v597 = vadd.f32 %v570, %v595
      %598 = vst.msk [vmem:[%s563] sm:$0xff] %vm335, %v597
      %599 = vst.msk [vmem:[%s538] sm:$0xff] %vm384, %v543
      %600 = vrot.lane.b32.xlu0 %v332, 104
      %v601 = vpop.permute.xlu0 %600
      %602 = vrot.lane.b32.xlu0 %v333, 104
      %v603 = vpop.permute.xlu0 %602
      %v604 = vsel %vm335, %v601, 0
      %v606 = vsel %vm335, %v603, 0
      %608 = vmatpush.xpose.msra.mxu0 0.0
      %609 = vmatpush.xpose.msra.mxu0 0.0
      %610 = vmatpush.xpose.msra.mxu0 0.0
      %611 = vmatpush.xpose.msra.mxu0 0.0
      %612 = vmatpush.xpose.msra.mxu0 0.0
      %613 = vmatpush.xpose.msra.mxu0 0.0
      %614 = vmatpush.xpose.msra.mxu0 0.0
      %615 = vmatpush.xpose.msra.mxu0 0.0
      %616 = vmatpush.xpose.msra.mxu0 0.0
      %617 = vmatpush.xpose.msra.mxu0 0.0
      %618 = vmatpush.xpose.msra.mxu0 0.0
      %619 = vmatpush.xpose.msra.mxu0 0.0
      %620 = vmatpush.xpose.msra.mxu0 0.0
      %621 = vmatpush.xpose.msra.mxu0 0.0
      %622 = vmatpush.xpose.msra.mxu0 0.0
      %623 = vmatpush.xpose.msra.mxu0 %v606
      %624 = vmatmul.f32.gmra.mxu0 %v604
      %v625 = vpop.f32.mrf.mxu0
      %v626 = vadd.f32 0.0, %v625
      %627 = vdwg.mxu0
      %s628 = scalar_lea.vmem [#allocation2], 24
      %v629 = vld [vmem:[%s628] sm:$0xff]
      %v630 = vsel %vm335, %v626, -inf
      %631 = vmax.xlane.f32.xlu0 %v630
      %v632 = vpop.xlane.xlu0 %631
      %v633 = vmax.f32 %v629, %v632
      %v634 = vsub.f32 %v629, %v633
      %v635 = vmul.f32 %v634, 1.442695
      %v636 = vpow.pop %v635
      %638 = vset.pattern.permute.xlu0 0
      %639 = vperm.xlu0 %638, %v633
      %v640 = vpop.permute.xlu0 %639
      %v642 = vsub.f32 %v626, %v640
      %v643 = vmul.f32 %v642, 1.442695
      %v644 = vpow.pop %v643
      %s645 = scalar_lea.vmem [#allocation3], 24
      %v646 = vld [vmem:[%s645] sm:$0xff]
      %v647 = vmul.f32 %v636, %v646
      %v648 = vsel %vm335, %v644, 0.0
      %649 = vadd.xlane.f32.xlu0 %v648
      %v650 = vpop.xlane.xlu0 %649
      %v651 = vadd.f32 %v647, %v650
      %652 = vst.msk [vmem:[%s645] sm:$0xff] %vm384, %v651
      %s653 = scalar_lea.vmem [#allocation4], 24
      %v654 = vld [vmem:[%s653] sm:$0xff]
      %656 = vset.pattern.permute.xlu0 0
      %657 = vperm.xlu0 %656, %v636
      %v658 = vpop.permute.xlu0 %657
      %v660 = vmul.f32 %v658, %v654
      %661 = vrot.lane.b32.xlu0 %v334, 104
      %v662 = vpop.permute.xlu0 %661
      %v665 = vsel %vm335, %v644, 0
      %667 = vmatpush.msra.mxu0 0.0
      %668 = vmatpush.msra.mxu0 0.0
      %669 = vmatpush.msra.mxu0 0.0
      %670 = vmatpush.msra.mxu0 0.0
      %671 = vmatpush.msra.mxu0 0.0
      %672 = vmatpush.msra.mxu0 0.0
      %673 = vmatpush.msra.mxu0 0.0
      %674 = vmatpush.msra.mxu0 0.0
      %675 = vmatpush.msra.mxu0 0.0
      %676 = vmatpush.msra.mxu0 0.0
      %677 = vmatpush.msra.mxu0 0.0
      %678 = vmatpush.msra.mxu0 0.0
      %679 = vmatpush.msra.mxu0 0.0
      %680 = vmatpush.msra.mxu0 0.0
      %681 = vmatpush.msra.mxu0 0.0
      %682 = vmatpush.msra.mxu0 %v662
      %683 = vmatmul.f32.gmra.mxu0 %v665
      %v684 = vpop.f32.mrf.mxu0
      %v685 = vadd.f32 0.0, %v684
      %686 = vdwg.mxu0
      %v687 = vadd.f32 %v660, %v685
      %688 = vst.msk [vmem:[%s653] sm:$0xff] %vm335, %v687
      %689 = vst.msk [vmem:[%s628] sm:$0xff] %vm384, %v633
      // Predicated region
      $region45: #{_forward.7} parent=39 // pred_check
        %p690 = pneg %p314
      $region46: #{_forward.7} parent=39 // pred_check_branch
        %692 = sbr.rel (%p690) target = $region48
      $region47: #{_forward.7} parent=39 // pred_region
        %v693 = vld [vmem:[#allocation3] sm:$0xff]
        %v694 = vrcp.pop %v693
        %v695 = vmul.f32 %v693, %v694
        %v696 = vsub.f32 2.0, %v695
        %v697 = vmul.f32 %v694, %v696
        %v698 = vld [vmem:[#allocation4] sm:$0xff]
        %700 = vset.pattern.permute.xlu0 0
        %701 = vperm.xlu0 %700, %v697
        %v702 = vpop.permute.xlu0 %701
        %v704 = vmul.f32 %v698, %v702
        %v705 = vld [vmem:[%s464] sm:$0xff]
        %v706 = vrcp.pop %v705
        %v707 = vmul.f32 %v705, %v706
        %v708 = vsub.f32 2.0, %v707
        %v709 = vmul.f32 %v706, %v708
        %v710 = vld [vmem:[%s472] sm:$0xff]
        %712 = vset.pattern.permute.xlu0 0
        %713 = vperm.xlu0 %712, %v709
        %v714 = vpop.permute.xlu0 %713
        %v716 = vmul.f32 %v710, %v714
        %v717 = vld [vmem:[%s555] sm:$0xff]
        %v718 = vrcp.pop %v717
        %v719 = vmul.f32 %v717, %v718
        %v720 = vsub.f32 2.0, %v719
        %v721 = vmul.f32 %v718, %v720
        %v722 = vld [vmem:[%s563] sm:$0xff]
        %724 = vset.pattern.permute.xlu0 0
        %725 = vperm.xlu0 %724, %v721
        %v726 = vpop.permute.xlu0 %725
        %v728 = vmul.f32 %v722, %v726
        %v729 = vld [vmem:[%s645] sm:$0xff]
        %v730 = vrcp.pop %v729
        %v731 = vmul.f32 %v729, %v730
        %v732 = vsub.f32 2.0, %v731
        %v733 = vmul.f32 %v730, %v732
        %v734 = vld [vmem:[%s653] sm:$0xff]
        %736 = vset.pattern.permute.xlu0 0
        %737 = vperm.xlu0 %736, %v733
        %v738 = vpop.permute.xlu0 %737
        %v740 = vmul.f32 %v734, %v738
        %742 = vrot.lane.b32.xlu0 %v716, 8
        %v743 = vpop.permute.xlu0 %742
        %746 = vrot.lane.b32.xlu0 %v728, 16
        %v747 = vpop.permute.xlu0 %746
        %750 = vrot.lane.b32.xlu0 %v740, 24
        %v751 = vpop.permute.xlu0 %750
        %v753 = vsel %vm335, %v704, %v743
        %vm754 = vcmask 130048
        %v755 = vsel %vm754, %v753, %v747
        %vm756 = vcmask 195584
        %v757 = vsel %vm756, %v755, %v751
        %v758 = vld [vmem:[%s3] sm:$0xff]
        %v759 = vld [vmem:[%s3 + $0x8] sm:$0xff]
        %v760 = vld [vmem:[%s3 + $0x10] sm:$0xff]
        %v761 = vld [vmem:[%s3 + $0x18] sm:$0xff]
        %v762 = vld [vmem:[%s4] sm:$0x1]
        %v764 = vperm.slane %v762, 0
        %vm766 = vcmask 261120
        %v768 = vsel %vm766, %v757, 0
        %770 = vmatpush.msra.mxu0 0.0
        %771 = vmatpush.msra.mxu0 0.0
        %772 = vmatpush.msra.mxu0 0.0
        %773 = vmatpush.msra.mxu0 0.0
        %774 = vmatpush.msra.mxu0 0.0
        %775 = vmatpush.msra.mxu0 0.0
        %776 = vmatpush.msra.mxu0 0.0
        %777 = vmatpush.msra.mxu0 0.0
        %778 = vmatpush.msra.mxu0 0.0
        %779 = vmatpush.msra.mxu0 0.0
        %780 = vmatpush.msra.mxu0 0.0
        %781 = vmatpush.msra.mxu0 0.0
        %782 = vmatpush.msra.mxu0 %v761
        %783 = vmatpush.msra.mxu0 %v760
        %784 = vmatpush.msra.mxu0 %v759
        %785 = vmatpush.msra.mxu0 %v758
        %786 = vmatmul.f32.gmra.mxu0 %v768
        %v787 = vpop.f32.mrf.mxu0
        %v788 = vadd.f32 %v764, %v787
        %789 = vdwg.mxu0
        %790 = vst.msk [vmem:[%s313] sm:$0xff] %vm766, %v788
      $region48: #{_forward.7} parent=39 // pred_fallthru
        _
      %p791 = scmp.lt.s32.totalorder %s21, 1
      %s792 = scalar_select %p791, %s21, 1
      %p793 = scmp.lt.s32.totalorder %s22, 0
      %s794 = scalar_select %p793, %s22, 0
      %s795 = sadd.s32 %s794, %s792
      %s796 = smul.addr %s795, 8
      %s797 = scalar_lea.vmem %s5, %s796
      // Predicated region
      $region49: #{_forward.7} parent=39 // pred_check
        %p798 = pneg %p181
      $region50: #{_forward.7} parent=39 // pred_check_branch
        %800 = sbr.rel (%p798) target = $region52
      $region51: #{_forward.7} parent=39 // pred_region
        _
      $region52: #{_forward.7} parent=39 // pred_fallthru
        _
    $region40: #{_forward.7} parent=5 // pred_fallthru
      _
    %p801 = scmp.le.s32.totalorder 2, %s11
    // Predicated region
    $region53: #{_forward.7} parent=5 // pred_check
      %p802 = pneg %p801
    $region54: #{_forward.7} parent=5 // pred_check_branch
      %804 = sbr.rel (%p802) target = $region56
    $region55: #{_forward.7} parent=5 // pred_region
      %s805 = ssub.s32 %s11, 2
      // Predicated region
      $region57: #{_forward.7} parent=55 // pred_check
        %p806 = pneg %p187
      $region58: #{_forward.7} parent=55 // pred_check_branch
        %808 = sbr.rel (%p806) target = $region60
      $region59: #{_forward.7} parent=55 // pred_region
        %p809 = scmp.lt.s32.totalorder %s24, 1
        %s810 = scalar_select %p809, %s24, 1
        %p811 = scmp.lt.s32.totalorder %s25, 0
        %s812 = scalar_select %p811, %s25, 0
        %s813 = sadd.s32 %s812, %s810
        %s814 = smul.addr %s813, 8
        %s815 = scalar_lea.vmem %s5, %s814
      $region60: #{_forward.7} parent=55 // pred_fallthru
        _
    $region56: #{_forward.7} parent=5 // pred_fallthru
      _
  $region6: #{_forward.7} parent=0 // loop_footer
    %s15 = sadd.s32 1, %s11
  $region7: #{_forward.7} parent=0 // loop_footer_branch
    %10 = sbr.rel target = $region3
  $region8: #{_forward.7} parent=0 // loop_exit
    _

</llo_original>
